<compile_context>
chip_gen: v7x
topology: tpu7x:2x2x1
jax: 0.10.0
libtpu: 0.0.40
codegen_flags: <defaults>
</compile_context>

<pallas_src>
import functools
import math

import jax
import jax.numpy as jnp
from jax.experimental import pallas as pl
from jax.experimental.pallas import tpu as pltpu

# Finite floor used only on the softmax path (scores output keeps true -inf).
_MASK_FLOOR = -0.7 * float(jnp.finfo(jnp.float32).max)


def _cross_attn_kernel(x_ref, e_ref, bias_ref,
                       wq_ref, bq_ref, wk_ref, bk_ref, wv_ref, bv_ref,
                       out_ref, scores_ref,
                       qs_ref, m_ref, l_ref, acc_ref,
                       *, num_heads, head_dim):
    # Grid: (batch, q_tile, kv_tile); kv_tile is innermost / "arbitrary".
    ki = pl.program_id(2)
    nk = pl.num_programs(2)

    @pl.when(ki == 0)
    def _init():
        # Project the query tile once per (batch, q-tile).  Scale 1/sqrt(hd)
        # and the transpose of Wq are folded in by the wrapper.
        q = jnp.dot(x_ref[0], wq_ref[...],
                    preferred_element_type=jnp.float32) + bq_ref[...]
        qs_ref[...] = q.astype(jnp.bfloat16)
        m_ref[...] = jnp.full_like(m_ref, -jnp.inf)
        l_ref[...] = jnp.zeros_like(l_ref)
        acc_ref[...] = jnp.zeros_like(acc_ref)

    # Project this kv tile (bf16 MXU operands, f32 accumulation).
    e = e_ref[0]                                               # (tk, H) bf16
    k = (jnp.dot(e, wk_ref[...], preferred_element_type=jnp.float32)
         + bk_ref[...]).astype(jnp.bfloat16)                   # (tk, H)
    v = (jnp.dot(e, wv_ref[...], preferred_element_type=jnp.float32)
         + bv_ref[...]).astype(jnp.bfloat16)                   # (tk, H)
    bias = bias_ref[0]                                         # (1, tk) f32, -inf at masked

    # Contract last dims of q and k (q @ k^T) without materializing k.T.
    dn = (((1,), (1,)), ((), ()))

    # Static loop over heads (small fixed count).
    # TODO(synk): for large head_dim, a single heads-batched lax.dot_general
    # would fill the 256-wide MXU better than per-head (tq x hd) dots.
    for h in range(num_heads):
        lo = h * head_dim
        hi = lo + head_dim
        qh = qs_ref[:, lo:hi]                                  # (tq, hd) bf16
        kh = k[:, lo:hi]                                       # (tk, hd) bf16
        vh = v[:, lo:hi]                                       # (tk, hd) bf16

        s = jax.lax.dot_general(qh, kh, dn,
                                preferred_element_type=jnp.float32) + bias  # (tq, tk)
        scores_ref[0, h] = s            # pre-softmax scores, -inf where masked

        # Online (flash-style) softmax accumulation across kv tiles, in f32.
        s = jnp.maximum(s, _MASK_FLOOR)                        # finite floor (NaN-free)
        m_prev = m_ref[h]                                      # (tq, 1)
        m_new = jnp.maximum(m_prev, jnp.max(s, axis=-1, keepdims=True))
        alpha = jnp.exp(m_prev - m_new)
        p = jnp.exp(s - m_new)
        l_ref[h] = alpha * l_ref[h] + jnp.sum(p, axis=-1, keepdims=True)
        acc_ref[h] = alpha * acc_ref[h] + jnp.dot(
            p.astype(jnp.bfloat16), vh, preferred_element_type=jnp.float32)
        m_ref[h] = m_new

    @pl.when(ki == nk - 1)
    def _finalize():
        # Normalize and emit one lane-dense (tq, H) store.
        ctx = [acc_ref[h] * pl.reciprocal(l_ref[h], approx=True)
               for h in range(num_heads)]
        out_ref[0] = jnp.concatenate(ctx, axis=-1).astype(out_ref.dtype)
    # output_layer=False (default): attention_output = context (no residual).
    # TODO(synk): mono_attend=True (gumbel_softmax hard=True) branch not implemented.


def cross_attention(hidden_states, encoder_hidden_states, encoder_attention_mask,
                    wq, bq, wk, bk, wv, bv, num_heads,
                    q_tile=128, kv_tile=128):
    B, Sq, H = hidden_states.shape
    _, Skv, _ = encoder_hidden_states.shape
    assert H % num_heads == 0
    head_dim = H // num_heads
    scale = 1.0 / math.sqrt(head_dim)

    tq = min(q_tile, Sq)
    tk = min(kv_tile, Skv)
    assert Sq % tq == 0 and Skv % tk == 0, "Sq/Skv must divide the tile sizes"

    # Pre-transpose weights to (in, out), fold 1/sqrt(hd) into the q projection,
    # and cast MXU operands to bf16 (accumulation stays f32 inside the kernel).
    wq_t = (wq * scale).T.astype(jnp.bfloat16)
    wk_t = wk.T.astype(jnp.bfloat16)
    wv_t = wv.T.astype(jnp.bfloat16)
    bq_s = (bq * scale).astype(jnp.float32).reshape(1, H)
    bk_s = bk.astype(jnp.float32).reshape(1, H)
    bv_s = bv.astype(jnp.float32).reshape(1, H)

    x_bf = hidden_states.astype(jnp.bfloat16)
    e_bf = encoder_hidden_states.astype(jnp.bfloat16)

    # Lane-dense additive mask bias; -inf so stored scores match masked_fill.
    bias = jnp.where(encoder_attention_mask == 0, -jnp.inf, 0.0)
    bias = bias.astype(jnp.float32).reshape(B, 1, Skv)

    kernel = functools.partial(_cross_attn_kernel,
                               num_heads=num_heads, head_dim=head_dim)

    out_shapes = (
        jax.ShapeDtypeStruct((B, Sq, H), jnp.float32),
        jax.ShapeDtypeStruct((B, num_heads, Sq, Skv), jnp.float32),
    )

    grid = (B, Sq // tq, Skv // tk)

    grid_spec = pltpu.PrefetchScalarGridSpec(
        num_scalar_prefetch=0,
        grid=grid,
        in_specs=[
            pl.BlockSpec((1, tq, H), lambda b, qi, ki: (b, qi, 0)),   # x (bf16)
            pl.BlockSpec((1, tk, H), lambda b, qi, ki: (b, ki, 0)),   # enc (bf16)
            pl.BlockSpec((1, 1, tk), lambda b, qi, ki: (b, 0, ki)),   # mask bias (f32)
            pl.BlockSpec((H, H), lambda b, qi, ki: (0, 0)),           # Wq^T (scaled, bf16)
            pl.BlockSpec((1, H), lambda b, qi, ki: (0, 0)),           # bq (scaled, f32)
            pl.BlockSpec((H, H), lambda b, qi, ki: (0, 0)),           # Wk^T
            pl.BlockSpec((1, H), lambda b, qi, ki: (0, 0)),           # bk
            pl.BlockSpec((H, H), lambda b, qi, ki: (0, 0)),           # Wv^T
            pl.BlockSpec((1, H), lambda b, qi, ki: (0, 0)),           # bv
        ],
        out_specs=[
            pl.BlockSpec((1, tq, H), lambda b, qi, ki: (b, qi, 0)),                 # output
            pl.BlockSpec((1, num_heads, tq, tk), lambda b, qi, ki: (b, 0, qi, ki)),  # scores
        ],
        scratch_shapes=[
            pltpu.VMEM((tq, H), jnp.bfloat16),                 # cached projected q
            pltpu.VMEM((num_heads, tq, 1), jnp.float32),       # m (running max)
            pltpu.VMEM((num_heads, tq, 1), jnp.float32),       # l (running denom)
            pltpu.VMEM((num_heads, tq, head_dim), jnp.float32) # acc (running context)
        ],
    )

    return pl.pallas_call(
        kernel,
        out_shape=out_shapes,
        grid_spec=grid_spec,
        compiler_params=pltpu.CompilerParams(
            dimension_semantics=("parallel", "parallel", "arbitrary")),
    )(x_bf, e_bf, bias, wq_t, bq_s, wk_t, bk_s, wv_t, bv_s)


def cross_attention_ref(x, enc, mask, wq, bq, wk, bk, wv, bv, num_heads):
    """Pure-JAX f32 reference mirroring the PyTorch forward."""
    B, Sq, H = x.shape
    _, Skv, _ = enc.shape
    hd = H // num_heads

    def shape_heads(t):
        return t.reshape(B, -1, num_heads, hd).transpose(0, 2, 1, 3)

    q = shape_heads(x @ wq.T + bq)
    k = shape_heads(enc @ wk.T + bk)
    v = shape_heads(enc @ wv.T + bv)
    scores = jnp.einsum('bhqd,bhkd->bhqk', q, k) / math.sqrt(hd)
    scores = jnp.where(mask[:, None, None, :] == 0, -jnp.inf, scores)
    probs = jax.nn.softmax(scores, axis=-1)
    ctx = jnp.einsum('bhqk,bhkd->bhqd', probs, v)
    ctx = ctx.transpose(0, 2, 1, 3).reshape(B, Sq, H)
    return ctx, scores


if __name__ == "__main__":
    B, Sq, Skv, H, NH = 2, 8, 8, 32, 4

    key = jax.random.PRNGKey(0)
    ks = jax.random.split(key, 8)
    hidden_states = jax.random.normal(ks[0], (B, Sq, H), jnp.float32)
    encoder_hidden = jax.random.normal(ks[1], (B, Skv, H), jnp.float32)

    # Deterministic mask: batch 0 attends to everything, batch 1 masks last 2 kv slots.
    mask = jnp.ones((B, Skv), jnp.int32)
    mask = mask.at[1, -2:].set(0)

    # Deterministic parameter init (nn.Linear-style fan-in scaling).
    bound = 1.0 / math.sqrt(H)
    wq = jax.random.uniform(ks[2], (H, H), jnp.float32, -bound, bound)
    wk = jax.random.uniform(ks[3], (H, H), jnp.float32, -bound, bound)
    wv = jax.random.uniform(ks[4], (H, H), jnp.float32, -bound, bound)
    bq = jax.random.uniform(ks[5], (H,), jnp.float32, -bound, bound)
    bk = jax.random.uniform(ks[6], (H,), jnp.float32, -bound, bound)
    bv = jax.random.uniform(ks[7], (H,), jnp.float32, -bound, bound)

    out, scores = cross_attention(hidden_states, encoder_hidden, mask,
                                  wq, bq, wk, bk, wv, bv, NH)
    jax.block_until_ready((out, scores))

    out_ref, scores_ref = cross_attention_ref(hidden_states, encoder_hidden, mask,
                                              wq, bq, wk, bk, wv, bv, NH)

    assert out.shape == (B, Sq, H)
    assert scores.shape == (B, NH, Sq, Skv)

    # Masked positions must be exactly -inf in both (matches masked_fill).
    finite = jnp.isfinite(scores_ref)
    assert bool(jnp.all(jnp.isfinite(scores) == finite))

    # Kernel uses bf16 MXU operands (f32 accumulation), so compare to the f32
    # reference with bf16-level tolerances; plumbing bugs would be O(1) off.
    assert jnp.allclose(out, out_ref, atol=5e-2, rtol=5e-2)
    assert jnp.allclose(jnp.where(finite, scores, 0.0),
                        jnp.where(finite, scores_ref, 0.0), atol=1e-1, rtol=1e-1)

    print("KERNEL_OK")
</pallas_src>

<mosaic_0001>
module attributes {stable_mosaic.version = 11 : i64} {
  func.func @_cross_attn_kernel(%arg0: i32, %arg1: i32, %arg2: i32, %arg3: memref<1x8x32xbf16, #tpu.memory_space<vmem>>, %arg4: memref<1x8x32xbf16, #tpu.memory_space<vmem>>, %arg5: memref<1x1x8xf32, #tpu.memory_space<vmem>>, %arg6: memref<32x32xbf16, #tpu.memory_space<vmem>>, %arg7: memref<1x32xf32, #tpu.memory_space<vmem>>, %arg8: memref<32x32xbf16, #tpu.memory_space<vmem>>, %arg9: memref<1x32xf32, #tpu.memory_space<vmem>>, %arg10: memref<32x32xbf16, #tpu.memory_space<vmem>>, %arg11: memref<1x32xf32, #tpu.memory_space<vmem>>, %arg12: memref<1x8x32xf32, #tpu.memory_space<vmem>>, %arg13: memref<1x4x8x8xf32, #tpu.memory_space<vmem>>, %arg14: memref<8x32xbf16, #tpu.memory_space<vmem>>, %arg15: memref<4x8x1xf32, #tpu.memory_space<vmem>>, %arg16: memref<4x8x1xf32, #tpu.memory_space<vmem>>, %arg17: memref<4x8x8xf32, #tpu.memory_space<vmem>>) attributes {dimension_semantics = [#tpu.dimension_semantics<parallel>, #tpu.dimension_semantics<parallel>, #tpu.dimension_semantics<arbitrary>], iteration_bounds = array<i64: 2, 1, 1>, scalar_prefetch = 0 : i64, scratch_operands = 4 : i64, tpu.core_type = #tpu.core_type<tc>, window_params = [{transform_indices = @transform_0, window_bounds = array<i64: 1, 8, 32>}, {transform_indices = @transform_1, window_bounds = array<i64: 1, 8, 32>}, {transform_indices = @transform_2, window_bounds = array<i64: 1, 1, 8>}, {pipeline_mode = #tpu.pipeline_mode<synchronous>, transform_indices = @transform_3, window_bounds = array<i64: 32, 32>}, {pipeline_mode = #tpu.pipeline_mode<synchronous>, transform_indices = @transform_4, window_bounds = array<i64: 1, 32>}, {pipeline_mode = #tpu.pipeline_mode<synchronous>, transform_indices = @transform_5, window_bounds = array<i64: 32, 32>}, {pipeline_mode = #tpu.pipeline_mode<synchronous>, transform_indices = @transform_6, window_bounds = array<i64: 1, 32>}, {pipeline_mode = #tpu.pipeline_mode<synchronous>, transform_indices = @transform_7, window_bounds = array<i64: 32, 32>}, {pipeline_mode = #tpu.pipeline_mode<synchronous>, transform_indices = @transform_8, window_bounds = array<i64: 1, 32>}, {transform_indices = @transform_9, window_bounds = array<i64: 1, 8, 32>}, {transform_indices = @transform_10, window_bounds = array<i64: 1, 4, 8, 8>}]} {
    %c0_i32 = arith.constant 0 : i32
    %0 = arith.cmpi eq, %arg2, %c0_i32 : i32
    %1 = arith.extui %0 : i1 to i32
    %c0_i32_0 = arith.constant 0 : i32
    %2 = arith.cmpi ne, %1, %c0_i32_0 : i32
    scf.if %2 {
      %c0_127 = arith.constant 0 : index
      %c0_128 = arith.constant 0 : index
      %c0_129 = arith.constant 0 : index
      %194 = vector.load %arg3[%c0_127, %c0_128, %c0_129] : memref<1x8x32xbf16, #tpu.memory_space<vmem>>, vector<1x8x32xbf16>
      %195 = vector.shape_cast %194 : vector<1x8x32xbf16> to vector<8x32xbf16>
      %c0_130 = arith.constant 0 : index
      %c0_131 = arith.constant 0 : index
      %196 = vector.load %arg6[%c0_130, %c0_131] : memref<32x32xbf16, #tpu.memory_space<vmem>>, vector<32x32xbf16>
      %cst_132 = arith.constant dense<0.000000e+00> : vector<8x32xf32>
      %197 = tpu.matmul %195, %196, %cst_132 {dimension_numbers = #tpu.dot_dimension_numbers<[1], [0], [0], [1], [0, 0, 1, 1], [], []>} : vector<8x32xbf16>, vector<32x32xbf16>, vector<8x32xf32> -> vector<8x32xf32>
      %c0_133 = arith.constant 0 : index
      %c0_134 = arith.constant 0 : index
      %198 = vector.load %arg7[%c0_133, %c0_134] : memref<1x32xf32, #tpu.memory_space<vmem>>, vector<1x32xf32>
      %199 = vector.broadcast %198 : vector<1x32xf32> to vector<8x32xf32>
      %200 = arith.addf %197, %199 : vector<8x32xf32>
      %201 = arith.truncf %200 : vector<8x32xf32> to vector<8x32xbf16>
      %c0_135 = arith.constant 0 : index
      %c0_136 = arith.constant 0 : index
      %202 = vector.load %arg14[%c0_135, %c0_136] : memref<8x32xbf16, #tpu.memory_space<vmem>>, vector<8x32xbf16>
      tpu.vector_store %arg14[%c0_135, %c0_136], %201 {strides = array<i32>} : memref<8x32xbf16, #tpu.memory_space<vmem>>, vector<8x32xbf16>,
      %cst_137 = arith.constant 0xFF800000 : f32
      %203 = vector.broadcast %cst_137 : f32 to vector<4x8x1xf32>
      %c0_138 = arith.constant 0 : index
      %c0_139 = arith.constant 0 : index
      %c0_140 = arith.constant 0 : index
      %204 = vector.load %arg15[%c0_138, %c0_139, %c0_140] : memref<4x8x1xf32, #tpu.memory_space<vmem>>, vector<4x8x1xf32>
      tpu.vector_store %arg15[%c0_138, %c0_139, %c0_140], %203 {strides = array<i32>} : memref<4x8x1xf32, #tpu.memory_space<vmem>>, vector<4x8x1xf32>,
      %cst_141 = arith.constant 0.000000e+00 : f32
      %205 = vector.broadcast %cst_141 : f32 to vector<4x8x1xf32>
      %c0_142 = arith.constant 0 : index
      %c0_143 = arith.constant 0 : index
      %c0_144 = arith.constant 0 : index
      %206 = vector.load %arg16[%c0_142, %c0_143, %c0_144] : memref<4x8x1xf32, #tpu.memory_space<vmem>>, vector<4x8x1xf32>
      tpu.vector_store %arg16[%c0_142, %c0_143, %c0_144], %205 {strides = array<i32>} : memref<4x8x1xf32, #tpu.memory_space<vmem>>, vector<4x8x1xf32>,
      %cst_145 = arith.constant 0.000000e+00 : f32
      %207 = vector.broadcast %cst_145 : f32 to vector<4x8x8xf32>
      %c0_146 = arith.constant 0 : index
      %c0_147 = arith.constant 0 : index
      %c0_148 = arith.constant 0 : index
      %208 = vector.load %arg17[%c0_146, %c0_147, %c0_148] : memref<4x8x8xf32, #tpu.memory_space<vmem>>, vector<4x8x8xf32>
      tpu.vector_store %arg17[%c0_146, %c0_147, %c0_148], %207 {strides = array<i32>} : memref<4x8x8xf32, #tpu.memory_space<vmem>>, vector<4x8x8xf32>,
    } else {
    }
    %c0 = arith.constant 0 : index
    %c0_1 = arith.constant 0 : index
    %c0_2 = arith.constant 0 : index
    %3 = vector.load %arg4[%c0, %c0_1, %c0_2] : memref<1x8x32xbf16, #tpu.memory_space<vmem>>, vector<1x8x32xbf16>
    %4 = vector.shape_cast %3 : vector<1x8x32xbf16> to vector<8x32xbf16>
    %c0_3 = arith.constant 0 : index
    %c0_4 = arith.constant 0 : index
    %5 = vector.load %arg8[%c0_3, %c0_4] : memref<32x32xbf16, #tpu.memory_space<vmem>>, vector<32x32xbf16>
    %cst = arith.constant dense<0.000000e+00> : vector<8x32xf32>
    %6 = tpu.matmul %4, %5, %cst {dimension_numbers = #tpu.dot_dimension_numbers<[1], [0], [0], [1], [0, 0, 1, 1], [], []>} : vector<8x32xbf16>, vector<32x32xbf16>, vector<8x32xf32> -> vector<8x32xf32>
    %c0_5 = arith.constant 0 : index
    %c0_6 = arith.constant 0 : index
    %7 = vector.load %arg9[%c0_5, %c0_6] : memref<1x32xf32, #tpu.memory_space<vmem>>, vector<1x32xf32>
    %8 = vector.broadcast %7 : vector<1x32xf32> to vector<8x32xf32>
    %9 = arith.addf %6, %8 : vector<8x32xf32>
    %10 = arith.truncf %9 : vector<8x32xf32> to vector<8x32xbf16>
    %c0_7 = arith.constant 0 : index
    %c0_8 = arith.constant 0 : index
    %11 = vector.load %arg10[%c0_7, %c0_8] : memref<32x32xbf16, #tpu.memory_space<vmem>>, vector<32x32xbf16>
    %cst_9 = arith.constant dense<0.000000e+00> : vector<8x32xf32>
    %12 = tpu.matmul %4, %11, %cst_9 {dimension_numbers = #tpu.dot_dimension_numbers<[1], [0], [0], [1], [0, 0, 1, 1], [], []>} : vector<8x32xbf16>, vector<32x32xbf16>, vector<8x32xf32> -> vector<8x32xf32>
    %c0_10 = arith.constant 0 : index
    %c0_11 = arith.constant 0 : index
    %13 = vector.load %arg11[%c0_10, %c0_11] : memref<1x32xf32, #tpu.memory_space<vmem>>, vector<1x32xf32>
    %14 = vector.broadcast %13 : vector<1x32xf32> to vector<8x32xf32>
    %15 = arith.addf %12, %14 : vector<8x32xf32>
    %16 = arith.truncf %15 : vector<8x32xf32> to vector<8x32xbf16>
    %c0_12 = arith.constant 0 : index
    %c0_13 = arith.constant 0 : index
    %c0_14 = arith.constant 0 : index
    %17 = vector.load %arg5[%c0_12, %c0_13, %c0_14] : memref<1x1x8xf32, #tpu.memory_space<vmem>>, vector<1x1x8xf32>
    %18 = vector.shape_cast %17 : vector<1x1x8xf32> to vector<1x8xf32>
    %c0_15 = arith.constant 0 : index
    %c0_16 = arith.constant 0 : index
    %19 = vector.load %arg14[%c0_15, %c0_16] : memref<8x32xbf16, #tpu.memory_space<vmem>>, vector<8x8xbf16>
    %20 = vector.extract_strided_slice %10 {offsets = [0, 0], sizes = [8, 8], strides = [1, 1]} : vector<8x32xbf16> to vector<8x8xbf16>
    %21 = vector.extract_strided_slice %16 {offsets = [0, 0], sizes = [8, 8], strides = [1, 1]} : vector<8x32xbf16> to vector<8x8xbf16>
    %cst_17 = arith.constant dense<0.000000e+00> : vector<8x8xf32>
    %22 = tpu.matmul %19, %20, %cst_17 {dimension_numbers = #tpu.dot_dimension_numbers<[1], [1], [0], [0], [0, 0, 1, 0], [], []>} : vector<8x8xbf16>, vector<8x8xbf16>, vector<8x8xf32> -> vector<8x8xf32>
    %23 = vector.broadcast %18 : vector<1x8xf32> to vector<8x8xf32>
    %24 = arith.addf %22, %23 : vector<8x8xf32>
    %c0_18 = arith.constant 0 : index
    %c0_19 = arith.constant 0 : index
    %c0_20 = arith.constant 0 : index
    %c0_21 = arith.constant 0 : index
    %25 = vector.load %arg13[%c0_18, %c0_19, %c0_20, %c0_21] : memref<1x4x8x8xf32, #tpu.memory_space<vmem>>, vector<1x1x8x8xf32>
    %26 = vector.shape_cast %25 : vector<1x1x8x8xf32> to vector<8x8xf32>
    %27 = vector.shape_cast %24 : vector<8x8xf32> to vector<1x1x8x8xf32>
    tpu.vector_store %arg13[%c0_18, %c0_19, %c0_20, %c0_21], %27 {strides = array<i32>} : memref<1x4x8x8xf32, #tpu.memory_space<vmem>>, vector<1x1x8x8xf32>,
    %cst_22 = arith.constant -2.38197633E+38 : f32
    %28 = vector.broadcast %cst_22 : f32 to vector<8x8xf32>
    %29 = arith.maximumf %24, %28 : vector<8x8xf32>
    %c0_23 = arith.constant 0 : index
    %c0_24 = arith.constant 0 : index
    %c0_25 = arith.constant 0 : index
    %30 = vector.load %arg15[%c0_23, %c0_24, %c0_25] : memref<4x8x1xf32, #tpu.memory_space<vmem>>, vector<1x8x1xf32>
    %31 = vector.shape_cast %30 : vector<1x8x1xf32> to vector<8x1xf32>
    %cst_26 = arith.constant dense<0xFF800000> : vector<8xf32>
    %32 = vector.multi_reduction <maximumf>, %29, %cst_26 [1] : vector<8x8xf32> to vector<8xf32>
    %33 = vector.shape_cast %32 : vector<8xf32> to vector<8x1xf32>
    %34 = arith.maximumf %31, %33 : vector<8x1xf32>
    %35 = arith.subf %31, %34 : vector<8x1xf32>
    %36 = math.exp %35 : vector<8x1xf32>
    %37 = vector.broadcast %34 : vector<8x1xf32> to vector<8x8xf32>
    %38 = arith.subf %29, %37 : vector<8x8xf32>
    %39 = math.exp %38 : vector<8x8xf32>
    %c0_27 = arith.constant 0 : index
    %c0_28 = arith.constant 0 : index
    %c0_29 = arith.constant 0 : index
    %40 = vector.load %arg16[%c0_27, %c0_28, %c0_29] : memref<4x8x1xf32, #tpu.memory_space<vmem>>, vector<1x8x1xf32>
    %41 = vector.shape_cast %40 : vector<1x8x1xf32> to vector<8x1xf32>
    %42 = arith.mulf %36, %41 : vector<8x1xf32>
    %cst_30 = arith.constant dense<0.000000e+00> : vector<8xf32>
    %43 = vector.multi_reduction <add>, %39, %cst_30 [1] : vector<8x8xf32> to vector<8xf32>
    %44 = vector.shape_cast %43 : vector<8xf32> to vector<8x1xf32>
    %45 = arith.addf %42, %44 : vector<8x1xf32>
    %c0_31 = arith.constant 0 : index
    %c0_32 = arith.constant 0 : index
    %c0_33 = arith.constant 0 : index
    %46 = vector.load %arg16[%c0_31, %c0_32, %c0_33] : memref<4x8x1xf32, #tpu.memory_space<vmem>>, vector<1x8x1xf32>
    %47 = vector.shape_cast %46 : vector<1x8x1xf32> to vector<8x1xf32>
    %48 = vector.shape_cast %45 : vector<8x1xf32> to vector<1x8x1xf32>
    tpu.vector_store %arg16[%c0_31, %c0_32, %c0_33], %48 {strides = array<i32>} : memref<4x8x1xf32, #tpu.memory_space<vmem>>, vector<1x8x1xf32>,
    %c0_34 = arith.constant 0 : index
    %c0_35 = arith.constant 0 : index
    %c0_36 = arith.constant 0 : index
    %49 = vector.load %arg17[%c0_34, %c0_35, %c0_36] : memref<4x8x8xf32, #tpu.memory_space<vmem>>, vector<1x8x8xf32>
    %50 = vector.shape_cast %49 : vector<1x8x8xf32> to vector<8x8xf32>
    %51 = vector.broadcast %36 : vector<8x1xf32> to vector<8x8xf32>
    %52 = arith.mulf %51, %50 : vector<8x8xf32>
    %53 = arith.truncf %39 : vector<8x8xf32> to vector<8x8xbf16>
    %cst_37 = arith.constant dense<0.000000e+00> : vector<8x8xf32>
    %54 = tpu.matmul %53, %21, %cst_37 {dimension_numbers = #tpu.dot_dimension_numbers<[1], [0], [0], [1], [0, 0, 1, 1], [], []>} : vector<8x8xbf16>, vector<8x8xbf16>, vector<8x8xf32> -> vector<8x8xf32>
    %55 = arith.addf %52, %54 : vector<8x8xf32>
    %c0_38 = arith.constant 0 : index
    %c0_39 = arith.constant 0 : index
    %c0_40 = arith.constant 0 : index
    %56 = vector.load %arg17[%c0_38, %c0_39, %c0_40] : memref<4x8x8xf32, #tpu.memory_space<vmem>>, vector<1x8x8xf32>
    %57 = vector.shape_cast %56 : vector<1x8x8xf32> to vector<8x8xf32>
    %58 = vector.shape_cast %55 : vector<8x8xf32> to vector<1x8x8xf32>
    tpu.vector_store %arg17[%c0_38, %c0_39, %c0_40], %58 {strides = array<i32>} : memref<4x8x8xf32, #tpu.memory_space<vmem>>, vector<1x8x8xf32>,
    %c0_41 = arith.constant 0 : index
    %c0_42 = arith.constant 0 : index
    %c0_43 = arith.constant 0 : index
    %59 = vector.load %arg15[%c0_41, %c0_42, %c0_43] : memref<4x8x1xf32, #tpu.memory_space<vmem>>, vector<1x8x1xf32>
    %60 = vector.shape_cast %59 : vector<1x8x1xf32> to vector<8x1xf32>
    %61 = vector.shape_cast %34 : vector<8x1xf32> to vector<1x8x1xf32>
    tpu.vector_store %arg15[%c0_41, %c0_42, %c0_43], %61 {strides = array<i32>} : memref<4x8x1xf32, #tpu.memory_space<vmem>>, vector<1x8x1xf32>,
    %c0_44 = arith.constant 0 : index
    %c8 = arith.constant 8 : index
    %62 = vector.load %arg14[%c0_44, %c8] : memref<8x32xbf16, #tpu.memory_space<vmem>>, vector<8x8xbf16>
    %63 = vector.extract_strided_slice %10 {offsets = [0, 8], sizes = [8, 8], strides = [1, 1]} : vector<8x32xbf16> to vector<8x8xbf16>
    %64 = vector.extract_strided_slice %16 {offsets = [0, 8], sizes = [8, 8], strides = [1, 1]} : vector<8x32xbf16> to vector<8x8xbf16>
    %cst_45 = arith.constant dense<0.000000e+00> : vector<8x8xf32>
    %65 = tpu.matmul %62, %63, %cst_45 {dimension_numbers = #tpu.dot_dimension_numbers<[1], [1], [0], [0], [0, 0, 1, 0], [], []>} : vector<8x8xbf16>, vector<8x8xbf16>, vector<8x8xf32> -> vector<8x8xf32>
    %66 = vector.broadcast %18 : vector<1x8xf32> to vector<8x8xf32>
    %67 = arith.addf %65, %66 : vector<8x8xf32>
    %c0_46 = arith.constant 0 : index
    %c1 = arith.constant 1 : index
    %c0_47 = arith.constant 0 : index
    %c0_48 = arith.constant 0 : index
    %68 = vector.load %arg13[%c0_46, %c1, %c0_47, %c0_48] : memref<1x4x8x8xf32, #tpu.memory_space<vmem>>, vector<1x1x8x8xf32>
    %69 = vector.shape_cast %68 : vector<1x1x8x8xf32> to vector<8x8xf32>
    %70 = vector.shape_cast %67 : vector<8x8xf32> to vector<1x1x8x8xf32>
    tpu.vector_store %arg13[%c0_46, %c1, %c0_47, %c0_48], %70 {strides = array<i32>} : memref<1x4x8x8xf32, #tpu.memory_space<vmem>>, vector<1x1x8x8xf32>,
    %cst_49 = arith.constant -2.38197633E+38 : f32
    %71 = vector.broadcast %cst_49 : f32 to vector<8x8xf32>
    %72 = arith.maximumf %67, %71 : vector<8x8xf32>
    %c1_50 = arith.constant 1 : index
    %c0_51 = arith.constant 0 : index
    %c0_52 = arith.constant 0 : index
    %73 = vector.load %arg15[%c1_50, %c0_51, %c0_52] : memref<4x8x1xf32, #tpu.memory_space<vmem>>, vector<1x8x1xf32>
    %74 = vector.shape_cast %73 : vector<1x8x1xf32> to vector<8x1xf32>
    %cst_53 = arith.constant dense<0xFF800000> : vector<8xf32>
    %75 = vector.multi_reduction <maximumf>, %72, %cst_53 [1] : vector<8x8xf32> to vector<8xf32>
    %76 = vector.shape_cast %75 : vector<8xf32> to vector<8x1xf32>
    %77 = arith.maximumf %74, %76 : vector<8x1xf32>
    %78 = arith.subf %74, %77 : vector<8x1xf32>
    %79 = math.exp %78 : vector<8x1xf32>
    %80 = vector.broadcast %77 : vector<8x1xf32> to vector<8x8xf32>
    %81 = arith.subf %72, %80 : vector<8x8xf32>
    %82 = math.exp %81 : vector<8x8xf32>
    %c1_54 = arith.constant 1 : index
    %c0_55 = arith.constant 0 : index
    %c0_56 = arith.constant 0 : index
    %83 = vector.load %arg16[%c1_54, %c0_55, %c0_56] : memref<4x8x1xf32, #tpu.memory_space<vmem>>, vector<1x8x1xf32>
    %84 = vector.shape_cast %83 : vector<1x8x1xf32> to vector<8x1xf32>
    %85 = arith.mulf %79, %84 : vector<8x1xf32>
    %cst_57 = arith.constant dense<0.000000e+00> : vector<8xf32>
    %86 = vector.multi_reduction <add>, %82, %cst_57 [1] : vector<8x8xf32> to vector<8xf32>
    %87 = vector.shape_cast %86 : vector<8xf32> to vector<8x1xf32>
    %88 = arith.addf %85, %87 : vector<8x1xf32>
    %c1_58 = arith.constant 1 : index
    %c0_59 = arith.constant 0 : index
    %c0_60 = arith.constant 0 : index
    %89 = vector.load %arg16[%c1_58, %c0_59, %c0_60] : memref<4x8x1xf32, #tpu.memory_space<vmem>>, vector<1x8x1xf32>
    %90 = vector.shape_cast %89 : vector<1x8x1xf32> to vector<8x1xf32>
    %91 = vector.shape_cast %88 : vector<8x1xf32> to vector<1x8x1xf32>
    tpu.vector_store %arg16[%c1_58, %c0_59, %c0_60], %91 {strides = array<i32>} : memref<4x8x1xf32, #tpu.memory_space<vmem>>, vector<1x8x1xf32>,
    %c1_61 = arith.constant 1 : index
    %c0_62 = arith.constant 0 : index
    %c0_63 = arith.constant 0 : index
    %92 = vector.load %arg17[%c1_61, %c0_62, %c0_63] : memref<4x8x8xf32, #tpu.memory_space<vmem>>, vector<1x8x8xf32>
    %93 = vector.shape_cast %92 : vector<1x8x8xf32> to vector<8x8xf32>
    %94 = vector.broadcast %79 : vector<8x1xf32> to vector<8x8xf32>
    %95 = arith.mulf %94, %93 : vector<8x8xf32>
    %96 = arith.truncf %82 : vector<8x8xf32> to vector<8x8xbf16>
    %cst_64 = arith.constant dense<0.000000e+00> : vector<8x8xf32>
    %97 = tpu.matmul %96, %64, %cst_64 {dimension_numbers = #tpu.dot_dimension_numbers<[1], [0], [0], [1], [0, 0, 1, 1], [], []>} : vector<8x8xbf16>, vector<8x8xbf16>, vector<8x8xf32> -> vector<8x8xf32>
    %98 = arith.addf %95, %97 : vector<8x8xf32>
    %c1_65 = arith.constant 1 : index
    %c0_66 = arith.constant 0 : index
    %c0_67 = arith.constant 0 : index
    %99 = vector.load %arg17[%c1_65, %c0_66, %c0_67] : memref<4x8x8xf32, #tpu.memory_space<vmem>>, vector<1x8x8xf32>
    %100 = vector.shape_cast %99 : vector<1x8x8xf32> to vector<8x8xf32>
    %101 = vector.shape_cast %98 : vector<8x8xf32> to vector<1x8x8xf32>
    tpu.vector_store %arg17[%c1_65, %c0_66, %c0_67], %101 {strides = array<i32>} : memref<4x8x8xf32, #tpu.memory_space<vmem>>, vector<1x8x8xf32>,
    %c1_68 = arith.constant 1 : index
    %c0_69 = arith.constant 0 : index
    %c0_70 = arith.constant 0 : index
    %102 = vector.load %arg15[%c1_68, %c0_69, %c0_70] : memref<4x8x1xf32, #tpu.memory_space<vmem>>, vector<1x8x1xf32>
    %103 = vector.shape_cast %102 : vector<1x8x1xf32> to vector<8x1xf32>
    %104 = vector.shape_cast %77 : vector<8x1xf32> to vector<1x8x1xf32>
    tpu.vector_store %arg15[%c1_68, %c0_69, %c0_70], %104 {strides = array<i32>} : memref<4x8x1xf32, #tpu.memory_space<vmem>>, vector<1x8x1xf32>,
    %c0_71 = arith.constant 0 : index
    %c16 = arith.constant 16 : index
    %105 = vector.load %arg14[%c0_71, %c16] : memref<8x32xbf16, #tpu.memory_space<vmem>>, vector<8x8xbf16>
    %106 = vector.extract_strided_slice %10 {offsets = [0, 16], sizes = [8, 8], strides = [1, 1]} : vector<8x32xbf16> to vector<8x8xbf16>
    %107 = vector.extract_strided_slice %16 {offsets = [0, 16], sizes = [8, 8], strides = [1, 1]} : vector<8x32xbf16> to vector<8x8xbf16>
    %cst_72 = arith.constant dense<0.000000e+00> : vector<8x8xf32>
    %108 = tpu.matmul %105, %106, %cst_72 {dimension_numbers = #tpu.dot_dimension_numbers<[1], [1], [0], [0], [0, 0, 1, 0], [], []>} : vector<8x8xbf16>, vector<8x8xbf16>, vector<8x8xf32> -> vector<8x8xf32>
    %109 = vector.broadcast %18 : vector<1x8xf32> to vector<8x8xf32>
    %110 = arith.addf %108, %109 : vector<8x8xf32>
    %c0_73 = arith.constant 0 : index
    %c2 = arith.constant 2 : index
    %c0_74 = arith.constant 0 : index
    %c0_75 = arith.constant 0 : index
    %111 = vector.load %arg13[%c0_73, %c2, %c0_74, %c0_75] : memref<1x4x8x8xf32, #tpu.memory_space<vmem>>, vector<1x1x8x8xf32>
    %112 = vector.shape_cast %111 : vector<1x1x8x8xf32> to vector<8x8xf32>
    %113 = vector.shape_cast %110 : vector<8x8xf32> to vector<1x1x8x8xf32>
    tpu.vector_store %arg13[%c0_73, %c2, %c0_74, %c0_75], %113 {strides = array<i32>} : memref<1x4x8x8xf32, #tpu.memory_space<vmem>>, vector<1x1x8x8xf32>,
    %cst_76 = arith.constant -2.38197633E+38 : f32
    %114 = vector.broadcast %cst_76 : f32 to vector<8x8xf32>
    %115 = arith.maximumf %110, %114 : vector<8x8xf32>
    %c2_77 = arith.constant 2 : index
    %c0_78 = arith.constant 0 : index
    %c0_79 = arith.constant 0 : index
    %116 = vector.load %arg15[%c2_77, %c0_78, %c0_79] : memref<4x8x1xf32, #tpu.memory_space<vmem>>, vector<1x8x1xf32>
    %117 = vector.shape_cast %116 : vector<1x8x1xf32> to vector<8x1xf32>
    %cst_80 = arith.constant dense<0xFF800000> : vector<8xf32>
    %118 = vector.multi_reduction <maximumf>, %115, %cst_80 [1] : vector<8x8xf32> to vector<8xf32>
    %119 = vector.shape_cast %118 : vector<8xf32> to vector<8x1xf32>
    %120 = arith.maximumf %117, %119 : vector<8x1xf32>
    %121 = arith.subf %117, %120 : vector<8x1xf32>
    %122 = math.exp %121 : vector<8x1xf32>
    %123 = vector.broadcast %120 : vector<8x1xf32> to vector<8x8xf32>
    %124 = arith.subf %115, %123 : vector<8x8xf32>
    %125 = math.exp %124 : vector<8x8xf32>
    %c2_81 = arith.constant 2 : index
    %c0_82 = arith.constant 0 : index
    %c0_83 = arith.constant 0 : index
    %126 = vector.load %arg16[%c2_81, %c0_82, %c0_83] : memref<4x8x1xf32, #tpu.memory_space<vmem>>, vector<1x8x1xf32>
    %127 = vector.shape_cast %126 : vector<1x8x1xf32> to vector<8x1xf32>
    %128 = arith.mulf %122, %127 : vector<8x1xf32>
    %cst_84 = arith.constant dense<0.000000e+00> : vector<8xf32>
    %129 = vector.multi_reduction <add>, %125, %cst_84 [1] : vector<8x8xf32> to vector<8xf32>
    %130 = vector.shape_cast %129 : vector<8xf32> to vector<8x1xf32>
    %131 = arith.addf %128, %130 : vector<8x1xf32>
    %c2_85 = arith.constant 2 : index
    %c0_86 = arith.constant 0 : index
    %c0_87 = arith.constant 0 : index
    %132 = vector.load %arg16[%c2_85, %c0_86, %c0_87] : memref<4x8x1xf32, #tpu.memory_space<vmem>>, vector<1x8x1xf32>
    %133 = vector.shape_cast %132 : vector<1x8x1xf32> to vector<8x1xf32>
    %134 = vector.shape_cast %131 : vector<8x1xf32> to vector<1x8x1xf32>
    tpu.vector_store %arg16[%c2_85, %c0_86, %c0_87], %134 {strides = array<i32>} : memref<4x8x1xf32, #tpu.memory_space<vmem>>, vector<1x8x1xf32>,
    %c2_88 = arith.constant 2 : index
    %c0_89 = arith.constant 0 : index
    %c0_90 = arith.constant 0 : index
    %135 = vector.load %arg17[%c2_88, %c0_89, %c0_90] : memref<4x8x8xf32, #tpu.memory_space<vmem>>, vector<1x8x8xf32>
    %136 = vector.shape_cast %135 : vector<1x8x8xf32> to vector<8x8xf32>
    %137 = vector.broadcast %122 : vector<8x1xf32> to vector<8x8xf32>
    %138 = arith.mulf %137, %136 : vector<8x8xf32>
    %139 = arith.truncf %125 : vector<8x8xf32> to vector<8x8xbf16>
    %cst_91 = arith.constant dense<0.000000e+00> : vector<8x8xf32>
    %140 = tpu.matmul %139, %107, %cst_91 {dimension_numbers = #tpu.dot_dimension_numbers<[1], [0], [0], [1], [0, 0, 1, 1], [], []>} : vector<8x8xbf16>, vector<8x8xbf16>, vector<8x8xf32> -> vector<8x8xf32>
    %141 = arith.addf %138, %140 : vector<8x8xf32>
    %c2_92 = arith.constant 2 : index
    %c0_93 = arith.constant 0 : index
    %c0_94 = arith.constant 0 : index
    %142 = vector.load %arg17[%c2_92, %c0_93, %c0_94] : memref<4x8x8xf32, #tpu.memory_space<vmem>>, vector<1x8x8xf32>
    %143 = vector.shape_cast %142 : vector<1x8x8xf32> to vector<8x8xf32>
    %144 = vector.shape_cast %141 : vector<8x8xf32> to vector<1x8x8xf32>
    tpu.vector_store %arg17[%c2_92, %c0_93, %c0_94], %144 {strides = array<i32>} : memref<4x8x8xf32, #tpu.memory_space<vmem>>, vector<1x8x8xf32>,
    %c2_95 = arith.constant 2 : index
    %c0_96 = arith.constant 0 : index
    %c0_97 = arith.constant 0 : index
    %145 = vector.load %arg15[%c2_95, %c0_96, %c0_97] : memref<4x8x1xf32, #tpu.memory_space<vmem>>, vector<1x8x1xf32>
    %146 = vector.shape_cast %145 : vector<1x8x1xf32> to vector<8x1xf32>
    %147 = vector.shape_cast %120 : vector<8x1xf32> to vector<1x8x1xf32>
    tpu.vector_store %arg15[%c2_95, %c0_96, %c0_97], %147 {strides = array<i32>} : memref<4x8x1xf32, #tpu.memory_space<vmem>>, vector<1x8x1xf32>,
    %c0_98 = arith.constant 0 : index
    %c24 = arith.constant 24 : index
    %148 = vector.load %arg14[%c0_98, %c24] : memref<8x32xbf16, #tpu.memory_space<vmem>>, vector<8x8xbf16>
    %149 = vector.extract_strided_slice %10 {offsets = [0, 24], sizes = [8, 8], strides = [1, 1]} : vector<8x32xbf16> to vector<8x8xbf16>
    %150 = vector.extract_strided_slice %16 {offsets = [0, 24], sizes = [8, 8], strides = [1, 1]} : vector<8x32xbf16> to vector<8x8xbf16>
    %cst_99 = arith.constant dense<0.000000e+00> : vector<8x8xf32>
    %151 = tpu.matmul %148, %149, %cst_99 {dimension_numbers = #tpu.dot_dimension_numbers<[1], [1], [0], [0], [0, 0, 1, 0], [], []>} : vector<8x8xbf16>, vector<8x8xbf16>, vector<8x8xf32> -> vector<8x8xf32>
    %152 = vector.broadcast %18 : vector<1x8xf32> to vector<8x8xf32>
    %153 = arith.addf %151, %152 : vector<8x8xf32>
    %c0_100 = arith.constant 0 : index
    %c3 = arith.constant 3 : index
    %c0_101 = arith.constant 0 : index
    %c0_102 = arith.constant 0 : index
    %154 = vector.load %arg13[%c0_100, %c3, %c0_101, %c0_102] : memref<1x4x8x8xf32, #tpu.memory_space<vmem>>, vector<1x1x8x8xf32>
    %155 = vector.shape_cast %154 : vector<1x1x8x8xf32> to vector<8x8xf32>
    %156 = vector.shape_cast %153 : vector<8x8xf32> to vector<1x1x8x8xf32>
    tpu.vector_store %arg13[%c0_100, %c3, %c0_101, %c0_102], %156 {strides = array<i32>} : memref<1x4x8x8xf32, #tpu.memory_space<vmem>>, vector<1x1x8x8xf32>,
    %cst_103 = arith.constant -2.38197633E+38 : f32
    %157 = vector.broadcast %cst_103 : f32 to vector<8x8xf32>
    %158 = arith.maximumf %153, %157 : vector<8x8xf32>
    %c3_104 = arith.constant 3 : index
    %c0_105 = arith.constant 0 : index
    %c0_106 = arith.constant 0 : index
    %159 = vector.load %arg15[%c3_104, %c0_105, %c0_106] : memref<4x8x1xf32, #tpu.memory_space<vmem>>, vector<1x8x1xf32>
    %160 = vector.shape_cast %159 : vector<1x8x1xf32> to vector<8x1xf32>
    %cst_107 = arith.constant dense<0xFF800000> : vector<8xf32>
    %161 = vector.multi_reduction <maximumf>, %158, %cst_107 [1] : vector<8x8xf32> to vector<8xf32>
    %162 = vector.shape_cast %161 : vector<8xf32> to vector<8x1xf32>
    %163 = arith.maximumf %160, %162 : vector<8x1xf32>
    %164 = arith.subf %160, %163 : vector<8x1xf32>
    %165 = math.exp %164 : vector<8x1xf32>
    %166 = vector.broadcast %163 : vector<8x1xf32> to vector<8x8xf32>
    %167 = arith.subf %158, %166 : vector<8x8xf32>
    %168 = math.exp %167 : vector<8x8xf32>
    %c3_108 = arith.constant 3 : index
    %c0_109 = arith.constant 0 : index
    %c0_110 = arith.constant 0 : index
    %169 = vector.load %arg16[%c3_108, %c0_109, %c0_110] : memref<4x8x1xf32, #tpu.memory_space<vmem>>, vector<1x8x1xf32>
    %170 = vector.shape_cast %169 : vector<1x8x1xf32> to vector<8x1xf32>
    %171 = arith.mulf %165, %170 : vector<8x1xf32>
    %cst_111 = arith.constant dense<0.000000e+00> : vector<8xf32>
    %172 = vector.multi_reduction <add>, %168, %cst_111 [1] : vector<8x8xf32> to vector<8xf32>
    %173 = vector.shape_cast %172 : vector<8xf32> to vector<8x1xf32>
    %174 = arith.addf %171, %173 : vector<8x1xf32>
    %c3_112 = arith.constant 3 : index
    %c0_113 = arith.constant 0 : index
    %c0_114 = arith.constant 0 : index
    %175 = vector.load %arg16[%c3_112, %c0_113, %c0_114] : memref<4x8x1xf32, #tpu.memory_space<vmem>>, vector<1x8x1xf32>
    %176 = vector.shape_cast %175 : vector<1x8x1xf32> to vector<8x1xf32>
    %177 = vector.shape_cast %174 : vector<8x1xf32> to vector<1x8x1xf32>
    tpu.vector_store %arg16[%c3_112, %c0_113, %c0_114], %177 {strides = array<i32>} : memref<4x8x1xf32, #tpu.memory_space<vmem>>, vector<1x8x1xf32>,
    %c3_115 = arith.constant 3 : index
    %c0_116 = arith.constant 0 : index
    %c0_117 = arith.constant 0 : index
    %178 = vector.load %arg17[%c3_115, %c0_116, %c0_117] : memref<4x8x8xf32, #tpu.memory_space<vmem>>, vector<1x8x8xf32>
    %179 = vector.shape_cast %178 : vector<1x8x8xf32> to vector<8x8xf32>
    %180 = vector.broadcast %165 : vector<8x1xf32> to vector<8x8xf32>
    %181 = arith.mulf %180, %179 : vector<8x8xf32>
    %182 = arith.truncf %168 : vector<8x8xf32> to vector<8x8xbf16>
    %cst_118 = arith.constant dense<0.000000e+00> : vector<8x8xf32>
    %183 = tpu.matmul %182, %150, %cst_118 {dimension_numbers = #tpu.dot_dimension_numbers<[1], [0], [0], [1], [0, 0, 1, 1], [], []>} : vector<8x8xbf16>, vector<8x8xbf16>, vector<8x8xf32> -> vector<8x8xf32>
    %184 = arith.addf %181, %183 : vector<8x8xf32>
    %c3_119 = arith.constant 3 : index
    %c0_120 = arith.constant 0 : index
    %c0_121 = arith.constant 0 : index
    %185 = vector.load %arg17[%c3_119, %c0_120, %c0_121] : memref<4x8x8xf32, #tpu.memory_space<vmem>>, vector<1x8x8xf32>
    %186 = vector.shape_cast %185 : vector<1x8x8xf32> to vector<8x8xf32>
    %187 = vector.shape_cast %184 : vector<8x8xf32> to vector<1x8x8xf32>
    tpu.vector_store %arg17[%c3_119, %c0_120, %c0_121], %187 {strides = array<i32>} : memref<4x8x8xf32, #tpu.memory_space<vmem>>, vector<1x8x8xf32>,
    %c3_122 = arith.constant 3 : index
    %c0_123 = arith.constant 0 : index
    %c0_124 = arith.constant 0 : index
    %188 = vector.load %arg15[%c3_122, %c0_123, %c0_124] : memref<4x8x1xf32, #tpu.memory_space<vmem>>, vector<1x8x1xf32>
    %189 = vector.shape_cast %188 : vector<1x8x1xf32> to vector<8x1xf32>
    %190 = vector.shape_cast %163 : vector<8x1xf32> to vector<1x8x1xf32>
    tpu.vector_store %arg15[%c3_122, %c0_123, %c0_124], %190 {strides = array<i32>} : memref<4x8x1xf32, #tpu.memory_space<vmem>>, vector<1x8x1xf32>,
    %c0_i32_125 = arith.constant 0 : i32
    %191 = arith.cmpi eq, %arg2, %c0_i32_125 : i32
    %192 = arith.extui %191 : i1 to i32
    %c0_i32_126 = arith.constant 0 : i32
    %193 = arith.cmpi ne, %192, %c0_i32_126 : i32
    scf.if %193 {
      %c0_127 = arith.constant 0 : index
      %c0_128 = arith.constant 0 : index
      %c0_129 = arith.constant 0 : index
      %194 = vector.load %arg17[%c0_127, %c0_128, %c0_129] : memref<4x8x8xf32, #tpu.memory_space<vmem>>, vector<1x8x8xf32>
      %195 = vector.shape_cast %194 : vector<1x8x8xf32> to vector<8x8xf32>
      %c0_130 = arith.constant 0 : index
      %c0_131 = arith.constant 0 : index
      %c0_132 = arith.constant 0 : index
      %196 = vector.load %arg16[%c0_130, %c0_131, %c0_132] : memref<4x8x1xf32, #tpu.memory_space<vmem>>, vector<1x8x1xf32>
      %197 = vector.shape_cast %196 : vector<1x8x1xf32> to vector<8x1xf32>
      %198 = tpu.reciprocal %197 {approx = true} : vector<8x1xf32> -> vector<8x1xf32>
      %199 = vector.broadcast %198 : vector<8x1xf32> to vector<8x8xf32>
      %200 = arith.mulf %195, %199 : vector<8x8xf32>
      %c1_133 = arith.constant 1 : index
      %c0_134 = arith.constant 0 : index
      %c0_135 = arith.constant 0 : index
      %201 = vector.load %arg17[%c1_133, %c0_134, %c0_135] : memref<4x8x8xf32, #tpu.memory_space<vmem>>, vector<1x8x8xf32>
      %202 = vector.shape_cast %201 : vector<1x8x8xf32> to vector<8x8xf32>
      %c1_136 = arith.constant 1 : index
      %c0_137 = arith.constant 0 : index
      %c0_138 = arith.constant 0 : index
      %203 = vector.load %arg16[%c1_136, %c0_137, %c0_138] : memref<4x8x1xf32, #tpu.memory_space<vmem>>, vector<1x8x1xf32>
      %204 = vector.shape_cast %203 : vector<1x8x1xf32> to vector<8x1xf32>
      %205 = tpu.reciprocal %204 {approx = true} : vector<8x1xf32> -> vector<8x1xf32>
      %206 = vector.broadcast %205 : vector<8x1xf32> to vector<8x8xf32>
      %207 = arith.mulf %202, %206 : vector<8x8xf32>
      %c2_139 = arith.constant 2 : index
      %c0_140 = arith.constant 0 : index
      %c0_141 = arith.constant 0 : index
      %208 = vector.load %arg17[%c2_139, %c0_140, %c0_141] : memref<4x8x8xf32, #tpu.memory_space<vmem>>, vector<1x8x8xf32>
      %209 = vector.shape_cast %208 : vector<1x8x8xf32> to vector<8x8xf32>
      %c2_142 = arith.constant 2 : index
      %c0_143 = arith.constant 0 : index
      %c0_144 = arith.constant 0 : index
      %210 = vector.load %arg16[%c2_142, %c0_143, %c0_144] : memref<4x8x1xf32, #tpu.memory_space<vmem>>, vector<1x8x1xf32>
      %211 = vector.shape_cast %210 : vector<1x8x1xf32> to vector<8x1xf32>
      %212 = tpu.reciprocal %211 {approx = true} : vector<8x1xf32> -> vector<8x1xf32>
      %213 = vector.broadcast %212 : vector<8x1xf32> to vector<8x8xf32>
      %214 = arith.mulf %209, %213 : vector<8x8xf32>
      %c3_145 = arith.constant 3 : index
      %c0_146 = arith.constant 0 : index
      %c0_147 = arith.constant 0 : index
      %215 = vector.load %arg17[%c3_145, %c0_146, %c0_147] : memref<4x8x8xf32, #tpu.memory_space<vmem>>, vector<1x8x8xf32>
      %216 = vector.shape_cast %215 : vector<1x8x8xf32> to vector<8x8xf32>
      %c3_148 = arith.constant 3 : index
      %c0_149 = arith.constant 0 : index
      %c0_150 = arith.constant 0 : index
      %217 = vector.load %arg16[%c3_148, %c0_149, %c0_150] : memref<4x8x1xf32, #tpu.memory_space<vmem>>, vector<1x8x1xf32>
      %218 = vector.shape_cast %217 : vector<1x8x1xf32> to vector<8x1xf32>
      %219 = tpu.reciprocal %218 {approx = true} : vector<8x1xf32> -> vector<8x1xf32>
      %220 = vector.broadcast %219 : vector<8x1xf32> to vector<8x8xf32>
      %221 = arith.mulf %216, %220 : vector<8x8xf32>
      %222 = tpu.concatenate %200, %207, %214, %221 in 1 : vector<8x8xf32>, vector<8x8xf32>, vector<8x8xf32>, vector<8x8xf32> -> vector<8x32xf32>
      %c0_151 = arith.constant 0 : index
      %c0_152 = arith.constant 0 : index
      %c0_153 = arith.constant 0 : index
      %223 = vector.load %arg12[%c0_151, %c0_152, %c0_153] : memref<1x8x32xf32, #tpu.memory_space<vmem>>, vector<1x8x32xf32>
      %224 = vector.shape_cast %223 : vector<1x8x32xf32> to vector<8x32xf32>
      %225 = vector.shape_cast %222 : vector<8x32xf32> to vector<1x8x32xf32>
      tpu.vector_store %arg12[%c0_151, %c0_152, %c0_153], %225 {strides = array<i32>} : memref<1x8x32xf32, #tpu.memory_space<vmem>>, vector<1x8x32xf32>,
    } else {
    }
    return
  }
  func.func @transform_0(%arg0: i32, %arg1: i32, %arg2: i32) -> (i32, i32, i32) {
    %c0_i32 = arith.constant 0 : i32
    %c0_i32_0 = arith.constant 0 : i32
    return %arg0, %arg1, %c0_i32 : i32, i32, i32
  }
  func.func @transform_1(%arg0: i32, %arg1: i32, %arg2: i32) -> (i32, i32, i32) {
    %c0_i32 = arith.constant 0 : i32
    %c0_i32_0 = arith.constant 0 : i32
    return %arg0, %arg2, %c0_i32 : i32, i32, i32
  }
  func.func @transform_2(%arg0: i32, %arg1: i32, %arg2: i32) -> (i32, i32, i32) {
    %c0_i32 = arith.constant 0 : i32
    %c0_i32_0 = arith.constant 0 : i32
    return %arg0, %c0_i32, %arg2 : i32, i32, i32
  }
  func.func @transform_3(%arg0: i32, %arg1: i32, %arg2: i32) -> (i32, i32) {
    %c0_i32 = arith.constant 0 : i32
    %c0_i32_0 = arith.constant 0 : i32
    %c0_i32_1 = arith.constant 0 : i32
    return %c0_i32, %c0_i32_0 : i32, i32
  }
  func.func @transform_4(%arg0: i32, %arg1: i32, %arg2: i32) -> (i32, i32) {
    %c0_i32 = arith.constant 0 : i32
    %c0_i32_0 = arith.constant 0 : i32
    %c0_i32_1 = arith.constant 0 : i32
    return %c0_i32, %c0_i32_0 : i32, i32
  }
  func.func @transform_5(%arg0: i32, %arg1: i32, %arg2: i32) -> (i32, i32) {
    %c0_i32 = arith.constant 0 : i32
    %c0_i32_0 = arith.constant 0 : i32
    %c0_i32_1 = arith.constant 0 : i32
    return %c0_i32, %c0_i32_0 : i32, i32
  }
  func.func @transform_6(%arg0: i32, %arg1: i32, %arg2: i32) -> (i32, i32) {
    %c0_i32 = arith.constant 0 : i32
    %c0_i32_0 = arith.constant 0 : i32
    %c0_i32_1 = arith.constant 0 : i32
    return %c0_i32, %c0_i32_0 : i32, i32
  }
  func.func @transform_7(%arg0: i32, %arg1: i32, %arg2: i32) -> (i32, i32) {
    %c0_i32 = arith.constant 0 : i32
    %c0_i32_0 = arith.constant 0 : i32
    %c0_i32_1 = arith.constant 0 : i32
    return %c0_i32, %c0_i32_0 : i32, i32
  }
  func.func @transform_8(%arg0: i32, %arg1: i32, %arg2: i32) -> (i32, i32) {
    %c0_i32 = arith.constant 0 : i32
    %c0_i32_0 = arith.constant 0 : i32
    %c0_i32_1 = arith.constant 0 : i32
    return %c0_i32, %c0_i32_0 : i32, i32
  }
  func.func @transform_9(%arg0: i32, %arg1: i32, %arg2: i32) -> (i32, i32, i32) {
    %c0_i32 = arith.constant 0 : i32
    %c0_i32_0 = arith.constant 0 : i32
    return %arg0, %arg1, %c0_i32 : i32, i32, i32
  }
  func.func @transform_10(%arg0: i32, %arg1: i32, %arg2: i32) -> (i32, i32, i32, i32) {
    %c0_i32 = arith.constant 0 : i32
    %c0_i32_0 = arith.constant 0 : i32
    return %arg0, %c0_i32, %arg1, %arg2 : i32, i32, i32, i32
  }
}

</mosaic_0001>

<llo_original>
// kernel: tpu_custom_call.1
$region0: #{tpu_custom_call.1}
  #allocation0 [shape = 'u32[]', space=smem, size = 0x4, offset = 0x4, fixed_abs, tag = 'smem constant byte address 0x4 - core index']
  #allocation1 [shape = 'u32[144,128]{1,0:T(1,128)}', space=vmem, size = 0x12000, scoped, tag = 'internal scratch']
  #allocation2 [shape = 'bf16[8,32]{1,0:T(8,128)(2,1)}', space=vmem, size = 0x800, scoped, tag = 'scratch operand']
  #allocation3 [shape = 'f32[4,8,1]{2,1,0:T(8,128)}', space=vmem, size = 0x4000, scoped, tag = 'scratch operand']
  #allocation4 [shape = 'f32[4,8,1]{2,1,0:T(8,128)}', space=vmem, size = 0x4000, scoped, tag = 'scratch operand']
  #allocation5 [shape = 'f32[4,8,8]{2,1,0:T(8,128)}', space=vmem, size = 0x4000, scoped, tag = 'scratch operand']
  %s0 = inlined_call_operand.hbm [shape: bf16[2,8,32], index: 0, kind: input, shape index: {}]
  %s1 = inlined_call_operand.hbm [shape: bf16[2,8,32], index: 1, kind: input, shape index: {}]
  %s2 = inlined_call_operand.vmem [shape: f32[2,1,8], index: 2, kind: input, shape index: {}]
  %s3 = inlined_call_operand.hbm [shape: bf16[32,32], index: 3, kind: input, shape index: {}]
  %s4 = inlined_call_operand.hbm [shape: f32[1,32], index: 4, kind: input, shape index: {}]
  %s5 = inlined_call_operand.vmem [shape: bf16[32,32], index: 5, kind: input, shape index: {}]
  %s6 = inlined_call_operand.vmem [shape: f32[1,32], index: 6, kind: input, shape index: {}]
  %s7 = inlined_call_operand.hbm [shape: bf16[32,32], index: 7, kind: input, shape index: {}]
  %s8 = inlined_call_operand.vmem [shape: f32[1,32], index: 8, kind: input, shape index: {}]
  %s9 = inlined_call_operand.hbm [shape: f32[2,8,32], index: 9, kind: output, shape index: {0}]
  %s10 = inlined_call_operand.hbm [shape: f32[2,4,8,8], index: 10, kind: output, shape index: {1}]
  %11 = xla_tuple %s9, %s10
  %s12 = sld [smem:[#allocation0]]
  $region105: #{tpu_custom_call.1} parent=0
    _
  %s14 = ssub.s32 1, %s12
  %s15 = scalar_select 0, %s14, %s12
  $region1: #{tpu_custom_call.1} parent=0
    #allocation6 [shape = 'u8[4096]{0}', space=vmem, size = 0x1000, scoped, tag = 'input window, operand 0']
    #allocation7 [shape = 's32[2]{0}', space=sflag, size = 0x8, scoped, tag = 'scoped memory for tpu_custom_call.1']
    #allocation8 [shape = 's32[2]{0}', space=sflag, size = 0x8, scoped, tag = 'scoped memory for tpu_custom_call.1']
    #allocation9 [shape = 'u8[4096]{0}', space=vmem, size = 0x1000, scoped, tag = 'input window, operand 1']
    #allocation10 [shape = 's32[2]{0}', space=sflag, size = 0x8, scoped, tag = 'scoped memory for tpu_custom_call.1']
    #allocation11 [shape = 'u8[8192]{0}', space=vmem, size = 0x2000, scoped, tag = 'input window, operand 3, single buffered']
    #allocation12 [shape = 'u8[512]{0}', space=vmem, size = 0x400, scoped, tag = 'input window, operand 4, single buffered']
    #allocation13 [shape = 's32[1]{0}', space=sflag, size = 0x4, scoped, tag = 'scoped memory for tpu_custom_call.1']
    #allocation14 [shape = 'u8[8192]{0}', space=vmem, size = 0x2000, scoped, tag = 'input window, operand 7, single buffered']
    #allocation15 [shape = 'u8[8192]{0}', space=vmem, size = 0x2000, scoped, tag = 'output window, operand 0']
    #allocation16 [shape = 'u8[32768]{0}', space=vmem, size = 0x8000, scoped, tag = 'output window, operand 1']
    #allocation17 [shape = 's32[2]{0}', space=sflag, size = 0x8, scoped, tag = 'scoped memory for tpu_custom_call.1']
    %16 = vsyncpa [#allocation7], 0
    %s17 = scalar_lea.sflag [#allocation7], 1
    %18 = vsyncpa %s17, 0
    %19 = vsyncpa [#allocation10], 0
    %s20 = scalar_lea.sflag [#allocation10], 1
    %21 = vsyncpa %s20, 0
    %22 = vsyncpa [#allocation13], 0
    %23 = vsyncpa [#allocation8], 0
    %s24 = scalar_lea.sflag [#allocation8], 1
    %25 = vsyncpa %s24, 0
    %26 = vsyncpa [#allocation17], 0
    %s27 = scalar_lea.sflag [#allocation17], 1
    %28 = vsyncpa %s27, 0
    loop: start=0, step=1, limit=4
    $region2: #{tpu_custom_call.1} parent=1 // loop_pre_header
      _
    $region3: #{tpu_custom_call.1} parent=1 // loop_header
      %s30 = sphi 0, %s34
      %p31 = scmp.ge.s32.totalorder %s30, 4
      %s37 = sphi 0, %s56
      %s38 = sphi 0, %s52
      %s39 = sphi 0, %s48
      %s40 = sphi 0, %s37
      %s41 = sphi 0, %s38
      %s42 = sphi 0, %s39
      %s43 = sphi 0, %s40
      %s44 = sphi 0, %s41
      %s45 = sphi 0, %s42
      %s61 = sphi 0, %s63
      %s64 = sphi 0, %s61
      %s65 = sphi 0, %s64
      %s81 = sphi 0, %s65
      %s89 = sphi 0, %s91
      %s92 = sphi 0, %s89
      %s93 = sphi 0, %s92
      %s109 = sphi 0, %s93
      %s117 = sphi 0, %s119
      %s120 = sphi 0, %s117
      %s121 = sphi 0, %s120
      %s137 = sphi 0, %s121
      %s141 = sphi 0, %s141
      %s143 = sphi 0, %s141
      %s144 = sphi 0, %s143
      %s158 = sphi 0, %s144
      %s162 = sphi 0, %s162
      %s164 = sphi 0, %s162
      %s165 = sphi 0, %s164
      %s179 = sphi 0, %s165
      %s183 = sphi 0, %s183
      %s185 = sphi 0, %s183
      %s186 = sphi 0, %s185
      %s200 = sphi 0, %s186
      %s204 = sphi 0, %s204
      %s206 = sphi 0, %s204
      %s207 = sphi 0, %s206
      %s221 = sphi 0, %s207
      %s225 = sphi 0, %s225
      %s227 = sphi 0, %s225
      %s228 = sphi 0, %s227
      %s242 = sphi 0, %s228
      %s246 = sphi 0, %s246
      %s248 = sphi 0, %s246
      %s249 = sphi 0, %s248
      %s263 = sphi 0, %s249
      %s271 = sphi 0, %s273
      %s274 = sphi 0, %s271
      %s275 = sphi 0, %s274
      %s291 = sphi 0, %s275
      %s301 = sphi 0, %s303
      %s304 = sphi 0, %s301
      %s305 = sphi 0, %s304
      %s321 = sphi 0, %s305
    $region4: #{tpu_custom_call.1} parent=1 // loop_header_branch
      %33 = sbr.rel (%p31) target = $region8
    $region5: #{tpu_custom_call.1} parent=1 // loop_body
      %s35 = ssub.s32 %s30, 1
      %s36 = ssub.s32 %s30, 2
      %s46 = sadd.s32 1, %s39
      %p47 = scmp.ge.s32.totalorder %s46, 1
      %s48 = scalar_select %p47, 0, %s46
      %s49 = sadd.s32 1, %s38
      %s50 = scalar_select %p47, %s49, %s38
      %p51 = scmp.ge.s32.totalorder %s50, 1
      %s52 = scalar_select %p51, 0, %s50
      %s53 = sadd.s32 1, %s37
      %s54 = scalar_select %p51, %s53, %s37
      %p55 = scmp.ge.s32.totalorder %s54, 2
      %s56 = scalar_select %p55, 0, %s54
      %s57 = ssub.s32 %s37, %s56
      %s58 = ssub.s32 %s38, %s52
      %s59 = sor.u32 %s57, %s58
      %p60 = scmp.eq.s32.totalorder %s59, 0
      %s62 = sadd.s32 %s61, 1
      %s63 = scalar_select %p60, %s61, %s62
      %p66 = pneg %p60
      %p67 = scmp.eq.s32.totalorder %s30, 1
      %p68 = por %p66, %p67
      %p69 = scmp.ne.s32.totalorder %s61, %s64
      %p70 = scmp.eq.s32.totalorder %s30, 0
      %p71 = por %p69, %p70
      %p72 = scmp.ne.s32.totalorder %s61, %s64
      %p73 = scmp.eq.s32.totalorder %s35, 1
      %p74 = por %p72, %p73
      %p75 = scmp.ne.s32.totalorder %s64, %s65
      %p76 = scmp.eq.s32.totalorder %s35, 0
      %p77 = por %p75, %p76
      %p78 = scmp.ne.s32.totalorder %s64, %s65
      %p79 = scmp.eq.s32.totalorder %s36, 1
      %p80 = por %p78, %p79
      %p82 = scmp.ne.s32.totalorder %s65, %s81
      %p83 = scmp.eq.s32.totalorder %s36, 0
      %p84 = por %p82, %p83
      %s85 = ssub.s32 %s37, %s56
      %s86 = ssub.s32 %s39, %s48
      %s87 = sor.u32 %s85, %s86
      %p88 = scmp.eq.s32.totalorder %s87, 0
      %s90 = sadd.s32 %s89, 1
      %s91 = scalar_select %p88, %s89, %s90
      %p94 = pneg %p88
      %p95 = scmp.eq.s32.totalorder %s30, 1
      %p96 = por %p94, %p95
      %p97 = scmp.ne.s32.totalorder %s89, %s92
      %p98 = scmp.eq.s32.totalorder %s30, 0
      %p99 = por %p97, %p98
      %p100 = scmp.ne.s32.totalorder %s89, %s92
      %p101 = scmp.eq.s32.totalorder %s35, 1
      %p102 = por %p100, %p101
      %p103 = scmp.ne.s32.totalorder %s92, %s93
      %p104 = scmp.eq.s32.totalorder %s35, 0
      %p105 = por %p103, %p104
      %p106 = scmp.ne.s32.totalorder %s92, %s93
      %p107 = scmp.eq.s32.totalorder %s36, 1
      %p108 = por %p106, %p107
      %p110 = scmp.ne.s32.totalorder %s93, %s109
      %p111 = scmp.eq.s32.totalorder %s36, 0
      %p112 = por %p110, %p111
      %s113 = ssub.s32 %s37, %s56
      %s114 = ssub.s32 %s39, %s48
      %s115 = sor.u32 %s113, %s114
      %p116 = scmp.eq.s32.totalorder %s115, 0
      %s118 = sadd.s32 %s117, 1
      %s119 = scalar_select %p116, %s117, %s118
      %p122 = pneg %p116
      %p123 = scmp.eq.s32.totalorder %s30, 1
      %p124 = por %p122, %p123
      %p125 = scmp.ne.s32.totalorder %s117, %s120
      %p126 = scmp.eq.s32.totalorder %s30, 0
      %p127 = por %p125, %p126
      %p128 = scmp.ne.s32.totalorder %s117, %s120
      %p129 = scmp.eq.s32.totalorder %s35, 1
      %p130 = por %p128, %p129
      %p131 = scmp.ne.s32.totalorder %s120, %s121
      %p132 = scmp.eq.s32.totalorder %s35, 0
      %p133 = por %p131, %p132
      %p134 = scmp.ne.s32.totalorder %s120, %s121
      %p135 = scmp.eq.s32.totalorder %s36, 1
      %p136 = por %p134, %p135
      %p138 = scmp.ne.s32.totalorder %s121, %s137
      %p139 = scmp.eq.s32.totalorder %s36, 0
      %p140 = por %p138, %p139
      %s142 = sadd.s32 %s141, 1
      %p145 = scmp.eq.s32.totalorder %s30, 1
      %p146 = scmp.ne.s32.totalorder %s141, %s143
      %p147 = scmp.eq.s32.totalorder %s30, 0
      %p148 = por %p146, %p147
      %p149 = scmp.ne.s32.totalorder %s141, %s143
      %p150 = scmp.eq.s32.totalorder %s35, 1
      %p151 = por %p149, %p150
      %p152 = scmp.ne.s32.totalorder %s143, %s144
      %p153 = scmp.eq.s32.totalorder %s35, 0
      %p154 = por %p152, %p153
      %p155 = scmp.ne.s32.totalorder %s143, %s144
      %p156 = scmp.eq.s32.totalorder %s36, 1
      %p157 = por %p155, %p156
      %p159 = scmp.ne.s32.totalorder %s144, %s158
      %p160 = scmp.eq.s32.totalorder %s36, 0
      %p161 = por %p159, %p160
      %s163 = sadd.s32 %s162, 1
      %p166 = scmp.eq.s32.totalorder %s30, 1
      %p167 = scmp.ne.s32.totalorder %s162, %s164
      %p168 = scmp.eq.s32.totalorder %s30, 0
      %p169 = por %p167, %p168
      %p170 = scmp.ne.s32.totalorder %s162, %s164
      %p171 = scmp.eq.s32.totalorder %s35, 1
      %p172 = por %p170, %p171
      %p173 = scmp.ne.s32.totalorder %s164, %s165
      %p174 = scmp.eq.s32.totalorder %s35, 0
      %p175 = por %p173, %p174
      %p176 = scmp.ne.s32.totalorder %s164, %s165
      %p177 = scmp.eq.s32.totalorder %s36, 1
      %p178 = por %p176, %p177
      %p180 = scmp.ne.s32.totalorder %s165, %s179
      %p181 = scmp.eq.s32.totalorder %s36, 0
      %p182 = por %p180, %p181
      %s184 = sadd.s32 %s183, 1
      %p187 = scmp.eq.s32.totalorder %s30, 1
      %p188 = scmp.ne.s32.totalorder %s183, %s185
      %p189 = scmp.eq.s32.totalorder %s30, 0
      %p190 = por %p188, %p189
      %p191 = scmp.ne.s32.totalorder %s183, %s185
      %p192 = scmp.eq.s32.totalorder %s35, 1
      %p193 = por %p191, %p192
      %p194 = scmp.ne.s32.totalorder %s185, %s186
      %p195 = scmp.eq.s32.totalorder %s35, 0
      %p196 = por %p194, %p195
      %p197 = scmp.ne.s32.totalorder %s185, %s186
      %p198 = scmp.eq.s32.totalorder %s36, 1
      %p199 = por %p197, %p198
      %p201 = scmp.ne.s32.totalorder %s186, %s200
      %p202 = scmp.eq.s32.totalorder %s36, 0
      %p203 = por %p201, %p202
      %s205 = sadd.s32 %s204, 1
      %p208 = scmp.eq.s32.totalorder %s30, 1
      %p209 = scmp.ne.s32.totalorder %s204, %s206
      %p210 = scmp.eq.s32.totalorder %s30, 0
      %p211 = por %p209, %p210
      %p212 = scmp.ne.s32.totalorder %s204, %s206
      %p213 = scmp.eq.s32.totalorder %s35, 1
      %p214 = por %p212, %p213
      %p215 = scmp.ne.s32.totalorder %s206, %s207
      %p216 = scmp.eq.s32.totalorder %s35, 0
      %p217 = por %p215, %p216
      %p218 = scmp.ne.s32.totalorder %s206, %s207
      %p219 = scmp.eq.s32.totalorder %s36, 1
      %p220 = por %p218, %p219
      %p222 = scmp.ne.s32.totalorder %s207, %s221
      %p223 = scmp.eq.s32.totalorder %s36, 0
      %p224 = por %p222, %p223
      %s226 = sadd.s32 %s225, 1
      %p229 = scmp.eq.s32.totalorder %s30, 1
      %p230 = scmp.ne.s32.totalorder %s225, %s227
      %p231 = scmp.eq.s32.totalorder %s30, 0
      %p232 = por %p230, %p231
      %p233 = scmp.ne.s32.totalorder %s225, %s227
      %p234 = scmp.eq.s32.totalorder %s35, 1
      %p235 = por %p233, %p234
      %p236 = scmp.ne.s32.totalorder %s227, %s228
      %p237 = scmp.eq.s32.totalorder %s35, 0
      %p238 = por %p236, %p237
      %p239 = scmp.ne.s32.totalorder %s227, %s228
      %p240 = scmp.eq.s32.totalorder %s36, 1
      %p241 = por %p239, %p240
      %p243 = scmp.ne.s32.totalorder %s228, %s242
      %p244 = scmp.eq.s32.totalorder %s36, 0
      %p245 = por %p243, %p244
      %s247 = sadd.s32 %s246, 1
      %p250 = scmp.eq.s32.totalorder %s30, 1
      %p251 = scmp.ne.s32.totalorder %s246, %s248
      %p252 = scmp.eq.s32.totalorder %s30, 0
      %p253 = por %p251, %p252
      %p254 = scmp.ne.s32.totalorder %s246, %s248
      %p255 = scmp.eq.s32.totalorder %s35, 1
      %p256 = por %p254, %p255
      %p257 = scmp.ne.s32.totalorder %s248, %s249
      %p258 = scmp.eq.s32.totalorder %s35, 0
      %p259 = por %p257, %p258
      %p260 = scmp.ne.s32.totalorder %s248, %s249
      %p261 = scmp.eq.s32.totalorder %s36, 1
      %p262 = por %p260, %p261
      %p264 = scmp.ne.s32.totalorder %s249, %s263
      %p265 = scmp.eq.s32.totalorder %s36, 0
      %p266 = por %p264, %p265
      %s267 = ssub.s32 %s37, %s56
      %s268 = ssub.s32 %s38, %s52
      %s269 = sor.u32 %s267, %s268
      %p270 = scmp.eq.s32.totalorder %s269, 0
      %s272 = sadd.s32 %s271, 1
      %s273 = scalar_select %p270, %s271, %s272
      %p276 = pneg %p270
      %p277 = scmp.eq.s32.totalorder %s30, 1
      %p278 = por %p276, %p277
      %p279 = scmp.ne.s32.totalorder %s271, %s274
      %p280 = scmp.eq.s32.totalorder %s30, 0
      %p281 = por %p279, %p280
      %p282 = scmp.ne.s32.totalorder %s271, %s274
      %p283 = scmp.eq.s32.totalorder %s35, 1
      %p284 = por %p282, %p283
      %p285 = scmp.ne.s32.totalorder %s274, %s275
      %p286 = scmp.eq.s32.totalorder %s35, 0
      %p287 = por %p285, %p286
      %p288 = scmp.ne.s32.totalorder %s274, %s275
      %p289 = scmp.eq.s32.totalorder %s36, 1
      %p290 = por %p288, %p289
      %p292 = scmp.ne.s32.totalorder %s275, %s291
      %p293 = scmp.eq.s32.totalorder %s36, 0
      %p294 = por %p292, %p293
      %s295 = ssub.s32 %s37, %s56
      %s296 = ssub.s32 %s38, %s52
      %s297 = sor.u32 %s295, %s296
      %s298 = ssub.s32 %s39, %s48
      %s299 = sor.u32 %s297, %s298
      %p300 = scmp.eq.s32.totalorder %s299, 0
      %s302 = sadd.s32 %s301, 1
      %s303 = scalar_select %p300, %s301, %s302
      %p306 = pneg %p300
      %p307 = scmp.eq.s32.totalorder %s30, 1
      %p308 = por %p306, %p307
      %p309 = scmp.ne.s32.totalorder %s301, %s304
      %p310 = scmp.eq.s32.totalorder %s30, 0
      %p311 = por %p309, %p310
      %p312 = scmp.ne.s32.totalorder %s301, %s304
      %p313 = scmp.eq.s32.totalorder %s35, 1
      %p314 = por %p312, %p313
      %p315 = scmp.ne.s32.totalorder %s304, %s305
      %p316 = scmp.eq.s32.totalorder %s35, 0
      %p317 = por %p315, %p316
      %p318 = scmp.ne.s32.totalorder %s304, %s305
      %p319 = scmp.eq.s32.totalorder %s36, 1
      %p320 = por %p318, %p319
      %p322 = scmp.ne.s32.totalorder %s305, %s321
      %p323 = scmp.eq.s32.totalorder %s36, 0
      %p324 = por %p322, %p323
      %p325 = scmp.le.s32.totalorder 1, %s30
      %p326 = scmp.lt.s32.totalorder %s30, 3
      %p327 = pnand %p325, %p326
      %p328 = pneg %p327
      // Predicated region
      $region9: #{tpu_custom_call.1} parent=5 // pred_check
        _
      $region10: #{tpu_custom_call.1} parent=5 // pred_check_branch
        %330 = sbr.rel (%p327) target = $region12
      $region11: #{tpu_custom_call.1} parent=5 // pred_region
        %s331 = ssub.s32 %s30, 1
        // Predicated region
        $region13: #{tpu_custom_call.1} parent=11 // pred_check
          %p332 = pneg %p154
        $region14: #{tpu_custom_call.1} parent=11 // pred_check_branch
          %334 = sbr.rel (%p332) target = $region16
        $region15: #{tpu_custom_call.1} parent=11 // pred_region
          %s336 = ssub.s32 256, 256
          %337 = vsyncadd [#allocation10], %s336
          %s338 = sshll.u32 [#allocation11], 4
          %s339 = int_to_ptr.vmem [resolvable:$true] %s338
          %344 = dma.hbm_to_vmem [thread:$0]  %s3, 256, %s339, [#allocation10], 64, 64, 4
        $region16: #{tpu_custom_call.1} parent=11 // pred_fallthru
          _
        // Predicated region
        $region17: #{tpu_custom_call.1} parent=11 // pred_check
          %p345 = pneg %p175
        $region18: #{tpu_custom_call.1} parent=11 // pred_check_branch
          %347 = sbr.rel (%p345) target = $region20
        $region19: #{tpu_custom_call.1} parent=11 // pred_region
          %s349 = ssub.s32 16, 16
          %350 = vsyncadd [#allocation13], %s349
          %s352 = sshll.u32 [#allocation12], 4
          %s353 = int_to_ptr.vmem [resolvable:$true] %s352
          %355 = dma.hbm_to_vmem [thread:$0]  %s4, 16, %s353, [#allocation13]
        $region20: #{tpu_custom_call.1} parent=11 // pred_fallthru
          _
        // Predicated region
        $region21: #{tpu_custom_call.1} parent=11 // pred_check
          %p356 = pneg %p196
        $region22: #{tpu_custom_call.1} parent=11 // pred_check_branch
          %358 = sbr.rel (%p356) target = $region24
        $region23: #{tpu_custom_call.1} parent=11 // pred_region
          _
        $region24: #{tpu_custom_call.1} parent=11 // pred_fallthru
          _
        // Predicated region
        $region25: #{tpu_custom_call.1} parent=11 // pred_check
          %p359 = pneg %p217
        $region26: #{tpu_custom_call.1} parent=11 // pred_check_branch
          %361 = sbr.rel (%p359) target = $region28
        $region27: #{tpu_custom_call.1} parent=11 // pred_region
          _
        $region28: #{tpu_custom_call.1} parent=11 // pred_fallthru
          _
        // Predicated region
        $region29: #{tpu_custom_call.1} parent=11 // pred_check
          %p362 = pneg %p238
        $region30: #{tpu_custom_call.1} parent=11 // pred_check_branch
          %364 = sbr.rel (%p362) target = $region32
        $region31: #{tpu_custom_call.1} parent=11 // pred_region
          %s366 = ssub.s32 256, 256
          %367 = vsyncadd [#allocation13], %s366
          %s368 = sshll.u32 [#allocation14], 4
          %s369 = int_to_ptr.vmem [resolvable:$true] %s368
          %374 = dma.hbm_to_vmem [thread:$0]  %s7, 256, %s369, [#allocation13], 64, 64, 4
        $region32: #{tpu_custom_call.1} parent=11 // pred_fallthru
          _
        // Predicated region
        $region33: #{tpu_custom_call.1} parent=11 // pred_check
          %p375 = pneg %p259
        $region34: #{tpu_custom_call.1} parent=11 // pred_check_branch
          %377 = sbr.rel (%p375) target = $region36
        $region35: #{tpu_custom_call.1} parent=11 // pred_region
          _
        $region36: #{tpu_custom_call.1} parent=11 // pred_fallthru
          _
      $region12: #{tpu_custom_call.1} parent=5 // pred_fallthru
        _
      %p378 = scmp.lt.s32.totalorder %s30, 2
      // Predicated region
      $region37: #{tpu_custom_call.1} parent=5 // pred_check
        %p379 = pneg %p378
      $region38: #{tpu_custom_call.1} parent=5 // pred_check_branch
        %381 = sbr.rel (%p379) target = $region40
      $region39: #{tpu_custom_call.1} parent=5 // pred_region
        // Predicated region
        $region41: #{tpu_custom_call.1} parent=39 // pred_check
          %p382 = pneg %p71
        $region42: #{tpu_custom_call.1} parent=39 // pred_check_branch
          %384 = sbr.rel (%p382) target = $region44
        $region43: #{tpu_custom_call.1} parent=39 // pred_region
          %s385 = sand.u32 %s61, 1
          %s386 = scalar_lea.sflag [#allocation7], %s385
          %s387 = sand.u32 %s61, 1
          %s388 = smul.addr %s387, 4
          %s389 = scalar_lea.vmem [#allocation6], %s388
          %s391 = ssub.s32 64, 64
          %392 = vsyncadd %s386, %s391
          %s393 = sadd.s32 %s38, %s37
          %s394 = smul.addr %s393, 64
          %s395 = scalar_lea.hbm %s0, %s394
          %s397 = sshll.u32 %s389, 4
          %s398 = int_to_ptr.vmem [resolvable:$true] %s397
          %400 = dma.hbm_to_vmem [thread:$0]  %s395, 64, %s398, %s386
        $region44: #{tpu_custom_call.1} parent=39 // pred_fallthru
          _
        // Predicated region
        $region45: #{tpu_custom_call.1} parent=39 // pred_check
          %p401 = pneg %p99
        $region46: #{tpu_custom_call.1} parent=39 // pred_check_branch
          %403 = sbr.rel (%p401) target = $region48
        $region47: #{tpu_custom_call.1} parent=39 // pred_region
          %s404 = sand.u32 %s30, 1
          %s405 = scalar_lea.sflag [#allocation10], %s404
          %s406 = sand.u32 %s89, 1
          %s407 = smul.addr %s406, 4
          %s408 = scalar_lea.vmem [#allocation9], %s407
          %s410 = ssub.s32 64, 64
          %411 = vsyncadd %s405, %s410
          %s412 = sadd.s32 %s39, %s37
          %s413 = smul.addr %s412, 64
          %s414 = scalar_lea.hbm %s1, %s413
          %s416 = sshll.u32 %s408, 4
          %s417 = int_to_ptr.vmem [resolvable:$true] %s416
          %419 = dma.hbm_to_vmem [thread:$0]  %s414, 64, %s417, %s405
        $region48: #{tpu_custom_call.1} parent=39 // pred_fallthru
          _
        // Predicated region
        $region49: #{tpu_custom_call.1} parent=39 // pred_check
          %p420 = pneg %p127
        $region50: #{tpu_custom_call.1} parent=39 // pred_check_branch
          %422 = sbr.rel (%p420) target = $region52
        $region51: #{tpu_custom_call.1} parent=39 // pred_region
          %p423 = scmp.lt.s32.totalorder %s37, 1
          %s424 = scalar_select %p423, %s37, 1
          %p425 = scmp.lt.s32.totalorder %s39, 0
          %s426 = scalar_select %p425, %s39, 0
          %s427 = sadd.s32 %s426, %s424
          %s428 = scalar_lea.vmem %s2, %s427
        $region52: #{tpu_custom_call.1} parent=39 // pred_fallthru
          _
      $region40: #{tpu_custom_call.1} parent=5 // pred_fallthru
        _
      %p429 = scmp.le.s32.totalorder 1, %s30
      %p430 = scmp.lt.s32.totalorder %s30, 3
      %p431 = pnand %p429, %p430
      %p432 = pneg %p431
      // Predicated region
      $region53: #{tpu_custom_call.1} parent=5 // pred_check
        _
      $region54: #{tpu_custom_call.1} parent=5 // pred_check_branch
        %434 = sbr.rel (%p431) target = $region56
      $region55: #{tpu_custom_call.1} parent=5 // pred_region
        %s435 = ssub.s32 %s30, 1
        %s436 = sand.u32 %s64, 1
        %s437 = scalar_lea.sflag [#allocation7], %s436
        %s438 = sand.u32 %s64, 1
        %s439 = smul.addr %s438, 4
        %s440 = scalar_lea.vmem [#allocation6], %s439
        // Predicated region
        $region57: #{tpu_custom_call.1} parent=55 // pred_check
          %p441 = pneg %p77
        $region58: #{tpu_custom_call.1} parent=55 // pred_check_branch
          %443 = sbr.rel (%p441) target = $region60
        $region59: #{tpu_custom_call.1} parent=55 // pred_region
          %444 = dma.done %s437, 64
        $region60: #{tpu_custom_call.1} parent=55 // pred_fallthru
          _
        %s445 = sand.u32 %s35, 1
        %s446 = scalar_lea.sflag [#allocation10], %s445
        %s447 = sand.u32 %s92, 1
        %s448 = smul.addr %s447, 4
        %s449 = scalar_lea.vmem [#allocation9], %s448
        // Predicated region
        $region61: #{tpu_custom_call.1} parent=55 // pred_check
          %p450 = pneg %p105
        $region62: #{tpu_custom_call.1} parent=55 // pred_check_branch
          %452 = sbr.rel (%p450) target = $region64
        $region63: #{tpu_custom_call.1} parent=55 // pred_region
          %453 = dma.done %s446, 64
        $region64: #{tpu_custom_call.1} parent=55 // pred_fallthru
          _
        // Predicated region
        $region65: #{tpu_custom_call.1} parent=55 // pred_check
          %p454 = pneg %p154
        $region66: #{tpu_custom_call.1} parent=55 // pred_check_branch
          %456 = sbr.rel (%p454) target = $region68
        $region67: #{tpu_custom_call.1} parent=55 // pred_region
          %457 = dma.done [#allocation10], 256
        $region68: #{tpu_custom_call.1} parent=55 // pred_fallthru
          _
        // Predicated region
        $region69: #{tpu_custom_call.1} parent=55 // pred_check
          %p458 = pneg %p175
        $region70: #{tpu_custom_call.1} parent=55 // pred_check_branch
          %460 = sbr.rel (%p458) target = $region72
        $region71: #{tpu_custom_call.1} parent=55 // pred_region
          %461 = dma.done [#allocation13], 16
        $region72: #{tpu_custom_call.1} parent=55 // pred_fallthru
          _
        // Predicated region
        $region73: #{tpu_custom_call.1} parent=55 // pred_check
          %p462 = pneg %p238
        $region74: #{tpu_custom_call.1} parent=55 // pred_check_branch
          %464 = sbr.rel (%p462) target = $region76
        $region75: #{tpu_custom_call.1} parent=55 // pred_region
          %465 = dma.done [#allocation13], 256
        $region76: #{tpu_custom_call.1} parent=55 // pred_fallthru
          _
        %s466 = sand.u32 %s64, 1
        %s467 = scalar_lea.sflag [#allocation7], %s466
        %s468 = sand.u32 %s64, 1
        %s469 = smul.addr %s468, 4
        %s470 = scalar_lea.vmem [#allocation6], %s469
        %p471 = pneg %p77
        %p472 = pneg %p74
        %s473 = sand.u32 %s35, 1
        %s474 = scalar_lea.sflag [#allocation10], %s473
        %s475 = sand.u32 %s92, 1
        %s476 = smul.addr %s475, 4
        %s477 = scalar_lea.vmem [#allocation9], %s476
        %p478 = pneg %p105
        %p479 = pneg %p102
        %p480 = scmp.lt.s32.totalorder %s40, 1
        %s481 = scalar_select %p480, %s40, 1
        %p482 = scmp.lt.s32.totalorder %s42, 0
        %s483 = scalar_select %p482, %s42, 0
        %s484 = sadd.s32 %s483, %s481
        %s485 = scalar_lea.vmem %s2, %s484
        %p486 = pneg %p133
        %p487 = pneg %p130
        %p488 = pneg %p154
        %p489 = pneg %p151
        %p490 = pneg %p175
        %p491 = pneg %p172
        %p492 = pneg %p196
        %p493 = pneg %p193
        %p494 = pneg %p217
        %p495 = pneg %p214
        %p496 = pneg %p238
        %p497 = pneg %p235
        %p498 = pneg %p259
        %p499 = pneg %p256
        %p500 = pneg %p287
        %p501 = pneg %p284
        %s502 = sand.u32 %s274, 1
        %s503 = scalar_lea.sflag [#allocation8], %s502
        %s504 = sand.u32 %s274, 1
        %s505 = smul.addr %s504, 8
        %s506 = scalar_lea.vmem [#allocation15], %s505
        %p507 = pneg %p317
        %p508 = pneg %p314
        %s509 = sand.u32 %s304, 1
        %s510 = scalar_lea.sflag [#allocation17], %s509
        %s511 = sand.u32 %s304, 1
        %s512 = smul.addr %s511, 32
        %s513 = scalar_lea.vmem [#allocation16], %s512
        %p514 = scmp.lt.s32.totalorder %s40, 1
        %s515 = scalar_select %p514, %s40, 1
        %p516 = scmp.lt.s32.totalorder %s42, 0
        %s517 = scalar_select %p516, %s42, 0
        %s518 = sadd.s32 %s517, %s515
        %s519 = scalar_lea.vmem %s2, %s518
        %p521 = scmp.eq.s32.totalorder %s42, 0
        // Predicated region
        $region77: #{tpu_custom_call.1} parent=55 // pred_check
          %p522 = pneg %p521
        $region78: #{tpu_custom_call.1} parent=55 // pred_check_branch
          %524 = sbr.rel (%p522) target = $region80
        $region79: #{tpu_custom_call.1} parent=55 // pred_region
          %v525 = vld [vmem:[%s440] sm:$0xf]
          %v526 = vld [vmem:[#allocation11] sm:$0xf]
          %v527 = vld [vmem:[#allocation11 + $0x4] sm:$0xf]
          %v528 = vld [vmem:[#allocation11 + $0x8] sm:$0xf]
          %v529 = vld [vmem:[#allocation11 + $0xc] sm:$0xf]
          %v530 = vld [vmem:[#allocation12] sm:$0x1]
          %v532 = vlaneseq
          %v533 = vshrl.u32 %v532, 7
          %v534 = vsub.s32 0, %v533
          %v535 = vrot.slane %v530, %v534
          %v541 = vunpack.c.l.b16 %v526
          %v542 = vunpack.c.l.b16 %v527
          %v543 = vunpack.c.l.b16 %v528
          %v544 = vunpack.c.l.b16 %v529
          %v545 = vpack.c.b16 %v542, %v541
          %v546 = vpack.c.b16 %v544, %v543
          %vm549 = vcmask 261120
          %v551 = vsel %vm549, %v525, 0
          %553 = vmatprep.subr.bf16.mxu0 0
          %554 = vmatpush1.bf16.msra.mxu0 %v545
          %555 = vmatprep.subr.bf16.mxu0 0
          %556 = vmatpush1.bf16.msra.mxu0 %v546
          %557 = vmatprep.subr.bf16.mxu0 0
          %558 = vmatpush1.bf16.msra.mxu0 0
          %559 = vmatprep.subr.bf16.mxu0 0
          %560 = vmatpush1.bf16.msra.mxu0 0
          %561 = vmatprep.subr.bf16.mxu0 0
          %562 = vmatpush1.bf16.msra.mxu0 0
          %563 = vmatprep.subr.bf16.mxu0 0
          %564 = vmatpush1.bf16.msra.mxu0 0
          %565 = vmatprep.subr.bf16.mxu0 0
          %566 = vmatpush1.bf16.msra.mxu0 0
          %567 = vmatprep.subr.bf16.mxu0 0
          %568 = vmatpush1.bf16.msra.mxu0 0
          %569 = vmatprep.subr.bf16.mxu0 0
          %570 = vmatpush1.bf16.msra.mxu0 0
          %571 = vmatprep.subr.bf16.mxu0 0
          %572 = vmatpush1.bf16.msra.mxu0 0
          %573 = vmatprep.subr.bf16.mxu0 0
          %574 = vmatpush1.bf16.msra.mxu0 0
          %575 = vmatprep.subr.bf16.mxu0 0
          %576 = vmatpush1.bf16.msra.mxu0 0
          %577 = vmatprep.subr.bf16.mxu0 0
          %578 = vmatpush1.bf16.msra.mxu0 0
          %579 = vmatprep.subr.bf16.mxu0 0
          %580 = vmatpush1.bf16.msra.mxu0 0
          %581 = vmatprep.subr.bf16.mxu0 0
          %582 = vmatpush1.bf16.msra.mxu0 0
          %583 = vmatprep.subr.bf16.mxu0 0
          %584 = vmatpush1.bf16.msra.mxu0 0
          %585 = vmatprep.mubr.bf16.mxu0 0
          %586 = vmatmul.mubr.bf16.gmra.mrb[0].mxu0 %v551
          %v587 = vpop.f32.mrb[0].mxu0
          %v588 = vadd.f32 %v535, %v587
          %v589 = vpop.f32.mrb[0].mxu0
          %v590 = vpop.f32.mrb[0].mxu0
          %v591 = vpop.f32.mrb[0].mxu0
          %592 = vdwg.mxu0
          %v593 = vpack.c.bf16 %v588, %v588
          %vm594 = vcmask 257024
          %595 = vst.msk [vmem:[#allocation2] sm:$0xf] %vm594, %v593
          %vm596 = vcmask 7168
          %597 = vst.msk [vmem:[#allocation3] sm:$0xff] %vm596, -inf
          %598 = vst.msk [vmem:[#allocation3 + $0x8] sm:$0xff] %vm596, -inf
          %599 = vst.msk [vmem:[#allocation3 + $0x10] sm:$0xff] %vm596, -inf
          %600 = vst.msk [vmem:[#allocation3 + $0x18] sm:$0xff] %vm596, -inf
          %601 = vst.msk [vmem:[#allocation4] sm:$0xff] %vm596, 0.0
          %602 = vst.msk [vmem:[#allocation4 + $0x8] sm:$0xff] %vm596, 0.0
          %603 = vst.msk [vmem:[#allocation4 + $0x10] sm:$0xff] %vm596, 0.0
          %604 = vst.msk [vmem:[#allocation4 + $0x18] sm:$0xff] %vm596, 0.0
          %vm605 = vcmask 64512
          %606 = vst.msk [vmem:[#allocation5] sm:$0xff] %vm605, 0.0
          %607 = vst.msk [vmem:[#allocation5 + $0x8] sm:$0xff] %vm605, 0.0
          %608 = vst.msk [vmem:[#allocation5 + $0x10] sm:$0xff] %vm605, 0.0
          %609 = vst.msk [vmem:[#allocation5 + $0x18] sm:$0xff] %vm605, 0.0
        $region80: #{tpu_custom_call.1} parent=55 // pred_fallthru
          _
        %v610 = vld [vmem:[%s449] sm:$0xf]
        %v611 = vld [vmem:[%s5] sm:$0xf]
        %v612 = vld [vmem:[%s5 + $0x4] sm:$0xf]
        %v613 = vld [vmem:[%s5 + $0x8] sm:$0xf]
        %v614 = vld [vmem:[%s5 + $0xc] sm:$0xf]
        %v615 = vld [vmem:[%s6] sm:$0x1]
        %v617 = vlaneseq
        %v618 = vshrl.u32 %v617, 7
        %v619 = vsub.s32 0, %v618
        %v620 = vrot.slane %v615, %v619
        %v626 = vunpack.c.l.b16 %v611
        %v627 = vunpack.c.l.b16 %v612
        %v628 = vunpack.c.l.b16 %v613
        %v629 = vunpack.c.l.b16 %v614
        %v630 = vpack.c.b16 %v627, %v626
        %v631 = vpack.c.b16 %v629, %v628
        %vm634 = vcmask 261120
        %v636 = vsel %vm634, %v610, 0
        %638 = vmatprep.subr.bf16.mxu0 0
        %639 = vmatpush1.bf16.msra.mxu0 %v630
        %640 = vmatprep.subr.bf16.mxu0 0
        %641 = vmatpush1.bf16.msra.mxu0 %v631
        %642 = vmatprep.subr.bf16.mxu0 0
        %643 = vmatpush1.bf16.msra.mxu0 0
        %644 = vmatprep.subr.bf16.mxu0 0
        %645 = vmatpush1.bf16.msra.mxu0 0
        %646 = vmatprep.subr.bf16.mxu0 0
        %647 = vmatpush1.bf16.msra.mxu0 0
        %648 = vmatprep.subr.bf16.mxu0 0
        %649 = vmatpush1.bf16.msra.mxu0 0
        %650 = vmatprep.subr.bf16.mxu0 0
        %651 = vmatpush1.bf16.msra.mxu0 0
        %652 = vmatprep.subr.bf16.mxu0 0
        %653 = vmatpush1.bf16.msra.mxu0 0
        %654 = vmatprep.subr.bf16.mxu0 0
        %655 = vmatpush1.bf16.msra.mxu0 0
        %656 = vmatprep.subr.bf16.mxu0 0
        %657 = vmatpush1.bf16.msra.mxu0 0
        %658 = vmatprep.subr.bf16.mxu0 0
        %659 = vmatpush1.bf16.msra.mxu0 0
        %660 = vmatprep.subr.bf16.mxu0 0
        %661 = vmatpush1.bf16.msra.mxu0 0
        %662 = vmatprep.subr.bf16.mxu0 0
        %663 = vmatpush1.bf16.msra.mxu0 0
        %664 = vmatprep.subr.bf16.mxu0 0
        %665 = vmatpush1.bf16.msra.mxu0 0
        %666 = vmatprep.subr.bf16.mxu0 0
        %667 = vmatpush1.bf16.msra.mxu0 0
        %668 = vmatprep.subr.bf16.mxu0 0
        %669 = vmatpush1.bf16.msra.mxu0 0
        %670 = vmatprep.mubr.bf16.mxu0 0
        %671 = vmatmul.mubr.bf16.gmra.mrb[0].mxu0 %v636
        %v672 = vpop.f32.mrb[0].mxu0
        %v673 = vadd.f32 %v620, %v672
        %v674 = vpop.f32.mrb[0].mxu0
        %v675 = vpop.f32.mrb[0].mxu0
        %v676 = vpop.f32.mrb[0].mxu0
        %677 = vdwg.mxu0
        %v678 = vpack.c.bf16 %v673, %v673
        %v679 = vld [vmem:[#allocation14] sm:$0xf]
        %v680 = vld [vmem:[#allocation14 + $0x4] sm:$0xf]
        %v681 = vld [vmem:[#allocation14 + $0x8] sm:$0xf]
        %v682 = vld [vmem:[#allocation14 + $0xc] sm:$0xf]
        %v683 = vld [vmem:[%s8] sm:$0x1]
        %v685 = vlaneseq
        %v686 = vshrl.u32 %v685, 7
        %v687 = vsub.s32 0, %v686
        %v688 = vrot.slane %v683, %v687
        %v694 = vunpack.c.l.b16 %v679
        %v695 = vunpack.c.l.b16 %v680
        %v696 = vunpack.c.l.b16 %v681
        %v697 = vunpack.c.l.b16 %v682
        %v698 = vpack.c.b16 %v695, %v694
        %v699 = vpack.c.b16 %v697, %v696
        %702 = vmatprep.subr.bf16.mxu0 0
        %703 = vmatpush1.bf16.msra.mxu0 %v698
        %704 = vmatprep.subr.bf16.mxu0 0
        %705 = vmatpush1.bf16.msra.mxu0 %v699
        %706 = vmatprep.subr.bf16.mxu0 0
        %707 = vmatpush1.bf16.msra.mxu0 0
        %708 = vmatprep.subr.bf16.mxu0 0
        %709 = vmatpush1.bf16.msra.mxu0 0
        %710 = vmatprep.subr.bf16.mxu0 0
        %711 = vmatpush1.bf16.msra.mxu0 0
        %712 = vmatprep.subr.bf16.mxu0 0
        %713 = vmatpush1.bf16.msra.mxu0 0
        %714 = vmatprep.subr.bf16.mxu0 0
        %715 = vmatpush1.bf16.msra.mxu0 0
        %716 = vmatprep.subr.bf16.mxu0 0
        %717 = vmatpush1.bf16.msra.mxu0 0
        %718 = vmatprep.subr.bf16.mxu0 0
        %719 = vmatpush1.bf16.msra.mxu0 0
        %720 = vmatprep.subr.bf16.mxu0 0
        %721 = vmatpush1.bf16.msra.mxu0 0
        %722 = vmatprep.subr.bf16.mxu0 0
        %723 = vmatpush1.bf16.msra.mxu0 0
        %724 = vmatprep.subr.bf16.mxu0 0
        %725 = vmatpush1.bf16.msra.mxu0 0
        %726 = vmatprep.subr.bf16.mxu0 0
        %727 = vmatpush1.bf16.msra.mxu0 0
        %728 = vmatprep.subr.bf16.mxu0 0
        %729 = vmatpush1.bf16.msra.mxu0 0
        %730 = vmatprep.subr.bf16.mxu0 0
        %731 = vmatpush1.bf16.msra.mxu0 0
        %732 = vmatprep.subr.bf16.mxu0 0
        %733 = vmatpush1.bf16.msra.mxu0 0
        %734 = vmatprep.mubr.bf16.mxu0 0
        %735 = vmatmul.mubr.bf16.gmra.mrb[0].mxu0 %v636
        %v736 = vpop.f32.mrb[0].mxu0
        %v737 = vadd.f32 %v688, %v736
        %v738 = vpop.f32.mrb[0].mxu0
        %v739 = vpop.f32.mrb[0].mxu0
        %v740 = vpop.f32.mrb[0].mxu0
        %741 = vdwg.mxu0
        %v742 = vpack.c.bf16 %v737, %v737
        %v743 = vld [vmem:[%s519] sm:$0x1]
        %v744 = vld [vmem:[#allocation2] sm:$0xf]
        %v746 = vlaneseq
        %v747 = vshrl.u32 %v746, 7
        %v748 = vsub.s32 0, %v747
        %v749 = vrot.slane %v743, %v748
        %vm751 = vcmask 64512
        %v753 = vsel %vm751, %v744, 0
        %v756 = vsel %vm751, %v678, 0
        %758 = vmatprep.subr.bf16.mxu0 0
        %759 = vmatpush1.bf16.xpose.msra.mxu0 %v756
        %760 = vmatprep.subr.bf16.mxu0 0
        %761 = vmatpush1.bf16.xpose.msra.mxu0 0
        %762 = vmatprep.subr.bf16.mxu0 0
        %763 = vmatpush1.bf16.xpose.msra.mxu0 0
        %764 = vmatprep.subr.bf16.mxu0 0
        %765 = vmatpush1.bf16.xpose.msra.mxu0 0
        %766 = vmatprep.subr.bf16.mxu0 0
        %767 = vmatpush1.bf16.xpose.msra.mxu0 0
        %768 = vmatprep.subr.bf16.mxu0 0
        %769 = vmatpush1.bf16.xpose.msra.mxu0 0
        %770 = vmatprep.subr.bf16.mxu0 0
        %771 = vmatpush1.bf16.xpose.msra.mxu0 0
        %772 = vmatprep.subr.bf16.mxu0 0
        %773 = vmatpush1.bf16.xpose.msra.mxu0 0
        %774 = vmatprep.subr.bf16.mxu0 0
        %775 = vmatpush1.bf16.xpose.msra.mxu0 0
        %776 = vmatprep.subr.bf16.mxu0 0
        %777 = vmatpush1.bf16.xpose.msra.mxu0 0
        %778 = vmatprep.subr.bf16.mxu0 0
        %779 = vmatpush1.bf16.xpose.msra.mxu0 0
        %780 = vmatprep.subr.bf16.mxu0 0
        %781 = vmatpush1.bf16.xpose.msra.mxu0 0
        %782 = vmatprep.subr.bf16.mxu0 0
        %783 = vmatpush1.bf16.xpose.msra.mxu0 0
        %784 = vmatprep.subr.bf16.mxu0 0
        %785 = vmatpush1.bf16.xpose.msra.mxu0 0
        %786 = vmatprep.subr.bf16.mxu0 0
        %787 = vmatpush1.bf16.xpose.msra.mxu0 0
        %788 = vmatprep.subr.bf16.mxu0 0
        %789 = vmatpush1.bf16.xpose.msra.mxu0 0
        %790 = vmatprep.mubr.bf16.mxu0 0
        %791 = vmatmul.mubr.bf16.gmra.mrb[0].mxu0 %v753
        %v792 = vpop.f32.mrb[0].mxu0
        %v793 = vadd.f32 %v749, %v792
        %v794 = vpop.f32.mrb[0].mxu0
        %v795 = vpop.f32.mrb[0].mxu0
        %v796 = vpop.f32.mrb[0].mxu0
        %797 = vdwg.mxu0
        %798 = vst.msk [vmem:[%s513] sm:$0xff] %vm751, %v793
        %v799 = vmax.f32 %v793, -2.3819763e+38
        %v800 = vld [vmem:[#allocation3] sm:$0xff]
        %v801 = vsel %vm751, %v799, -inf
        %802 = vmax.xlane.f32.xlu0 %v801
        %v803 = vpop.xlane.xlu0 %802
        %v804 = vmax.f32 %v800, %v803
        %v805 = vsub.f32 %v800, %v804
        %v806 = vmul.f32 %v805, 1.442695
        %v807 = vpow.pop %v806
        %809 = vset.pattern.permute.xlu0 0
        %810 = vperm.xlu0 %809, %v804
        %v811 = vpop.permute.xlu0 %810
        %v813 = vsub.f32 %v799, %v811
        %v814 = vmul.f32 %v813, 1.442695
        %v815 = vpow.pop %v814
        %v816 = vld [vmem:[#allocation4] sm:$0xff]
        %v817 = vmul.f32 %v807, %v816
        %v818 = vsel %vm751, %v815, 0.0
        %819 = vadd.xlane.f32.xlu0 %v818
        %v820 = vpop.xlane.xlu0 %819
        %v821 = vadd.f32 %v817, %v820
        %vm822 = vcmask 7168
        %823 = vst.msk [vmem:[#allocation4] sm:$0xff] %vm822, %v821
        %v824 = vld [vmem:[#allocation5] sm:$0xff]
        %826 = vset.pattern.permute.xlu0 0
        %827 = vperm.xlu0 %826, %v807
        %v828 = vpop.permute.xlu0 %827
        %v830 = vmul.f32 %v828, %v824
        %v831 = vpack.c.bf16 %v815, %v815
        %v833 = vsel %vm751, %v831, 0
        %vm835 = vcmask 1043456
        %v837 = vsel %vm835, %v742, 0
        %839 = vmatprep.subr.bf16.mxu0 0
        %840 = vmatpush1.bf16.msra.mxu0 %v837
        %841 = vmatprep.subr.bf16.mxu0 0
        %842 = vmatpush1.bf16.msra.mxu0 0
        %843 = vmatprep.subr.bf16.mxu0 0
        %844 = vmatpush1.bf16.msra.mxu0 0
        %845 = vmatprep.subr.bf16.mxu0 0
        %846 = vmatpush1.bf16.msra.mxu0 0
        %847 = vmatprep.subr.bf16.mxu0 0
        %848 = vmatpush1.bf16.msra.mxu0 0
        %849 = vmatprep.subr.bf16.mxu0 0
        %850 = vmatpush1.bf16.msra.mxu0 0
        %851 = vmatprep.subr.bf16.mxu0 0
        %852 = vmatpush1.bf16.msra.mxu0 0
        %853 = vmatprep.subr.bf16.mxu0 0
        %854 = vmatpush1.bf16.msra.mxu0 0
        %855 = vmatprep.subr.bf16.mxu0 0
        %856 = vmatpush1.bf16.msra.mxu0 0
        %857 = vmatprep.subr.bf16.mxu0 0
        %858 = vmatpush1.bf16.msra.mxu0 0
        %859 = vmatprep.subr.bf16.mxu0 0
        %860 = vmatpush1.bf16.msra.mxu0 0
        %861 = vmatprep.subr.bf16.mxu0 0
        %862 = vmatpush1.bf16.msra.mxu0 0
        %863 = vmatprep.subr.bf16.mxu0 0
        %864 = vmatpush1.bf16.msra.mxu0 0
        %865 = vmatprep.subr.bf16.mxu0 0
        %866 = vmatpush1.bf16.msra.mxu0 0
        %867 = vmatprep.subr.bf16.mxu0 0
        %868 = vmatpush1.bf16.msra.mxu0 0
        %869 = vmatprep.subr.bf16.mxu0 0
        %870 = vmatpush1.bf16.msra.mxu0 0
        %871 = vmatprep.mubr.bf16.mxu0 0
        %872 = vmatmul.mubr.bf16.gmra.mrb[0].mxu0 %v833
        %v873 = vpop.f32.mrb[0].mxu0
        %v874 = vadd.f32 0.0, %v873
        %v875 = vpop.f32.mrb[0].mxu0
        %v876 = vpop.f32.mrb[0].mxu0
        %v877 = vpop.f32.mrb[0].mxu0
        %878 = vdwg.mxu0
        %v879 = vadd.f32 %v830, %v874
        %880 = vst.msk [vmem:[#allocation5] sm:$0xff] %vm751, %v879
        %881 = vst.msk [vmem:[#allocation3] sm:$0xff] %vm822, %v804
        %v882 = vld [vmem:[#allocation2] sm:$0xf]
        %v884 = vunpack.c.l.b16 %v882
        %v885 = vpack.c.b16 %v884, %v884
        %886 = vrot.lane.b32.xlu0 %v885, 120
        %v887 = vpop.permute.xlu0 %886
        %889 = vrot.lane.b32.xlu0 %v678, 120
        %v890 = vpop.permute.xlu0 %889
        %v892 = vsel %vm751, %v887, 0
        %v895 = vsel %vm751, %v890, 0
        %897 = vmatprep.subr.bf16.mxu0 0
        %898 = vmatpush1.bf16.xpose.msra.mxu0 %v895
        %899 = vmatprep.subr.bf16.mxu0 0
        %900 = vmatpush1.bf16.xpose.msra.mxu0 0
        %901 = vmatprep.subr.bf16.mxu0 0
        %902 = vmatpush1.bf16.xpose.msra.mxu0 0
        %903 = vmatprep.subr.bf16.mxu0 0
        %904 = vmatpush1.bf16.xpose.msra.mxu0 0
        %905 = vmatprep.subr.bf16.mxu0 0
        %906 = vmatpush1.bf16.xpose.msra.mxu0 0
        %907 = vmatprep.subr.bf16.mxu0 0
        %908 = vmatpush1.bf16.xpose.msra.mxu0 0
        %909 = vmatprep.subr.bf16.mxu0 0
        %910 = vmatpush1.bf16.xpose.msra.mxu0 0
        %911 = vmatprep.subr.bf16.mxu0 0
        %912 = vmatpush1.bf16.xpose.msra.mxu0 0
        %913 = vmatprep.subr.bf16.mxu0 0
        %914 = vmatpush1.bf16.xpose.msra.mxu0 0
        %915 = vmatprep.subr.bf16.mxu0 0
        %916 = vmatpush1.bf16.xpose.msra.mxu0 0
        %917 = vmatprep.subr.bf16.mxu0 0
        %918 = vmatpush1.bf16.xpose.msra.mxu0 0
        %919 = vmatprep.subr.bf16.mxu0 0
        %920 = vmatpush1.bf16.xpose.msra.mxu0 0
        %921 = vmatprep.subr.bf16.mxu0 0
        %922 = vmatpush1.bf16.xpose.msra.mxu0 0
        %923 = vmatprep.subr.bf16.mxu0 0
        %924 = vmatpush1.bf16.xpose.msra.mxu0 0
        %925 = vmatprep.subr.bf16.mxu0 0
        %926 = vmatpush1.bf16.xpose.msra.mxu0 0
        %927 = vmatprep.subr.bf16.mxu0 0
        %928 = vmatpush1.bf16.xpose.msra.mxu0 0
        %929 = vmatprep.mubr.bf16.mxu0 0
        %930 = vmatmul.mubr.bf16.gmra.mrb[0].mxu0 %v892
        %v931 = vpop.f32.mrb[0].mxu0
        %v932 = vadd.f32 %v749, %v931
        %v933 = vpop.f32.mrb[0].mxu0
        %v934 = vpop.f32.mrb[0].mxu0
        %v935 = vpop.f32.mrb[0].mxu0
        %936 = vdwg.mxu0
        %s937 = scalar_lea.vmem %s513, 8 [#allocation16]
        %938 = vst.msk [vmem:[%s937] sm:$0xff] %vm751, %v932
        %v939 = vmax.f32 %v932, -2.3819763e+38
        %s940 = scalar_lea.vmem [#allocation3], 8
        %v941 = vld [vmem:[%s940] sm:$0xff]
        %v942 = vsel %vm751, %v939, -inf
        %943 = vmax.xlane.f32.xlu0 %v942
        %v944 = vpop.xlane.xlu0 %943
        %v945 = vmax.f32 %v941, %v944
        %v946 = vsub.f32 %v941, %v945
        %v947 = vmul.f32 %v946, 1.442695
        %v948 = vpow.pop %v947
        %950 = vset.pattern.permute.xlu0 0
        %951 = vperm.xlu0 %950, %v945
        %v952 = vpop.permute.xlu0 %951
        %v954 = vsub.f32 %v939, %v952
        %v955 = vmul.f32 %v954, 1.442695
        %v956 = vpow.pop %v955
        %s957 = scalar_lea.vmem [#allocation4], 8
        %v958 = vld [vmem:[%s957] sm:$0xff]
        %v959 = vmul.f32 %v948, %v958
        %v960 = vsel %vm751, %v956, 0.0
        %961 = vadd.xlane.f32.xlu0 %v960
        %v962 = vpop.xlane.xlu0 %961
        %v963 = vadd.f32 %v959, %v962
        %964 = vst.msk [vmem:[%s957] sm:$0xff] %vm822, %v963
        %s965 = scalar_lea.vmem [#allocation5], 8
        %v966 = vld [vmem:[%s965] sm:$0xff]
        %968 = vset.pattern.permute.xlu0 0
        %969 = vperm.xlu0 %968, %v948
        %v970 = vpop.permute.xlu0 %969
        %v972 = vmul.f32 %v970, %v966
        %v973 = vpack.c.bf16 %v956, %v956
        %975 = vrot.lane.b32.xlu0 %v742, 120
        %v976 = vpop.permute.xlu0 %975
        %v978 = vsel %vm751, %v973, 0
        %v981 = vsel %vm835, %v976, 0
        %983 = vmatprep.subr.bf16.mxu0 0
        %984 = vmatpush1.bf16.msra.mxu0 %v981
        %985 = vmatprep.subr.bf16.mxu0 0
        %986 = vmatpush1.bf16.msra.mxu0 0
        %987 = vmatprep.subr.bf16.mxu0 0
        %988 = vmatpush1.bf16.msra.mxu0 0
        %989 = vmatprep.subr.bf16.mxu0 0
        %990 = vmatpush1.bf16.msra.mxu0 0
        %991 = vmatprep.subr.bf16.mxu0 0
        %992 = vmatpush1.bf16.msra.mxu0 0
        %993 = vmatprep.subr.bf16.mxu0 0
        %994 = vmatpush1.bf16.msra.mxu0 0
        %995 = vmatprep.subr.bf16.mxu0 0
        %996 = vmatpush1.bf16.msra.mxu0 0
        %997 = vmatprep.subr.bf16.mxu0 0
        %998 = vmatpush1.bf16.msra.mxu0 0
        %999 = vmatprep.subr.bf16.mxu0 0
        %1000 = vmatpush1.bf16.msra.mxu0 0
        %1001 = vmatprep.subr.bf16.mxu0 0
        %1002 = vmatpush1.bf16.msra.mxu0 0
        %1003 = vmatprep.subr.bf16.mxu0 0
        %1004 = vmatpush1.bf16.msra.mxu0 0
        %1005 = vmatprep.subr.bf16.mxu0 0
        %1006 = vmatpush1.bf16.msra.mxu0 0
        %1007 = vmatprep.subr.bf16.mxu0 0
        %1008 = vmatpush1.bf16.msra.mxu0 0
        %1009 = vmatprep.subr.bf16.mxu0 0
        %1010 = vmatpush1.bf16.msra.mxu0 0
        %1011 = vmatprep.subr.bf16.mxu0 0
        %1012 = vmatpush1.bf16.msra.mxu0 0
        %1013 = vmatprep.subr.bf16.mxu0 0
        %1014 = vmatpush1.bf16.msra.mxu0 0
        %1015 = vmatprep.mubr.bf16.mxu0 0
        %1016 = vmatmul.mubr.bf16.gmra.mrb[0].mxu0 %v978
        %v1017 = vpop.f32.mrb[0].mxu0
        %v1018 = vadd.f32 0.0, %v1017
        %v1019 = vpop.f32.mrb[0].mxu0
        %v1020 = vpop.f32.mrb[0].mxu0
        %v1021 = vpop.f32.mrb[0].mxu0
        %1022 = vdwg.mxu0
        %v1023 = vadd.f32 %v972, %v1018
        %1024 = vst.msk [vmem:[%s965] sm:$0xff] %vm751, %v1023
        %1025 = vst.msk [vmem:[%s940] sm:$0xff] %vm822, %v945
        %v1026 = vld [vmem:[#allocation2] sm:$0xf]
        %v1028 = vunpack.c.l.b16 %v1026
        %v1029 = vpack.c.b16 %v1028, %v1028
        %1030 = vrot.lane.b32.xlu0 %v1029, 112
        %v1031 = vpop.permute.xlu0 %1030
        %1032 = vrot.lane.b32.xlu0 %v678, 112
        %v1033 = vpop.permute.xlu0 %1032
        %v1035 = vsel %vm751, %v1031, 0
        %v1038 = vsel %vm751, %v1033, 0
        %1040 = vmatprep.subr.bf16.mxu0 0
        %1041 = vmatpush1.bf16.xpose.msra.mxu0 %v1038
        %1042 = vmatprep.subr.bf16.mxu0 0
        %1043 = vmatpush1.bf16.xpose.msra.mxu0 0
        %1044 = vmatprep.subr.bf16.mxu0 0
        %1045 = vmatpush1.bf16.xpose.msra.mxu0 0
        %1046 = vmatprep.subr.bf16.mxu0 0
        %1047 = vmatpush1.bf16.xpose.msra.mxu0 0
        %1048 = vmatprep.subr.bf16.mxu0 0
        %1049 = vmatpush1.bf16.xpose.msra.mxu0 0
        %1050 = vmatprep.subr.bf16.mxu0 0
        %1051 = vmatpush1.bf16.xpose.msra.mxu0 0
        %1052 = vmatprep.subr.bf16.mxu0 0
        %1053 = vmatpush1.bf16.xpose.msra.mxu0 0
        %1054 = vmatprep.subr.bf16.mxu0 0
        %1055 = vmatpush1.bf16.xpose.msra.mxu0 0
        %1056 = vmatprep.subr.bf16.mxu0 0
        %1057 = vmatpush1.bf16.xpose.msra.mxu0 0
        %1058 = vmatprep.subr.bf16.mxu0 0
        %1059 = vmatpush1.bf16.xpose.msra.mxu0 0
        %1060 = vmatprep.subr.bf16.mxu0 0
        %1061 = vmatpush1.bf16.xpose.msra.mxu0 0
        %1062 = vmatprep.subr.bf16.mxu0 0
        %1063 = vmatpush1.bf16.xpose.msra.mxu0 0
        %1064 = vmatprep.subr.bf16.mxu0 0
        %1065 = vmatpush1.bf16.xpose.msra.mxu0 0
        %1066 = vmatprep.subr.bf16.mxu0 0
        %1067 = vmatpush1.bf16.xpose.msra.mxu0 0
        %1068 = vmatprep.subr.bf16.mxu0 0
        %1069 = vmatpush1.bf16.xpose.msra.mxu0 0
        %1070 = vmatprep.subr.bf16.mxu0 0
        %1071 = vmatpush1.bf16.xpose.msra.mxu0 0
        %1072 = vmatprep.mubr.bf16.mxu0 0
        %1073 = vmatmul.mubr.bf16.gmra.mrb[0].mxu0 %v1035
        %v1074 = vpop.f32.mrb[0].mxu0
        %v1075 = vadd.f32 %v749, %v1074
        %v1076 = vpop.f32.mrb[0].mxu0
        %v1077 = vpop.f32.mrb[0].mxu0
        %v1078 = vpop.f32.mrb[0].mxu0
        %1079 = vdwg.mxu0
        %s1080 = scalar_lea.vmem %s513, 16 [#allocation16]
        %1081 = vst.msk [vmem:[%s1080] sm:$0xff] %vm751, %v1075
        %v1082 = vmax.f32 %v1075, -2.3819763e+38
        %s1083 = scalar_lea.vmem [#allocation3], 16
        %v1084 = vld [vmem:[%s1083] sm:$0xff]
        %v1085 = vsel %vm751, %v1082, -inf
        %1086 = vmax.xlane.f32.xlu0 %v1085
        %v1087 = vpop.xlane.xlu0 %1086
        %v1088 = vmax.f32 %v1084, %v1087
        %v1089 = vsub.f32 %v1084, %v1088
        %v1090 = vmul.f32 %v1089, 1.442695
        %v1091 = vpow.pop %v1090
        %1093 = vset.pattern.permute.xlu0 0
        %1094 = vperm.xlu0 %1093, %v1088
        %v1095 = vpop.permute.xlu0 %1094
        %v1097 = vsub.f32 %v1082, %v1095
        %v1098 = vmul.f32 %v1097, 1.442695
        %v1099 = vpow.pop %v1098
        %s1100 = scalar_lea.vmem [#allocation4], 16
        %v1101 = vld [vmem:[%s1100] sm:$0xff]
        %v1102 = vmul.f32 %v1091, %v1101
        %v1103 = vsel %vm751, %v1099, 0.0
        %1104 = vadd.xlane.f32.xlu0 %v1103
        %v1105 = vpop.xlane.xlu0 %1104
        %v1106 = vadd.f32 %v1102, %v1105
        %1107 = vst.msk [vmem:[%s1100] sm:$0xff] %vm822, %v1106
        %s1108 = scalar_lea.vmem [#allocation5], 16
        %v1109 = vld [vmem:[%s1108] sm:$0xff]
        %1111 = vset.pattern.permute.xlu0 0
        %1112 = vperm.xlu0 %1111, %v1091
        %v1113 = vpop.permute.xlu0 %1112
        %v1115 = vmul.f32 %v1113, %v1109
        %v1116 = vpack.c.bf16 %v1099, %v1099
        %1117 = vrot.lane.b32.xlu0 %v742, 112
        %v1118 = vpop.permute.xlu0 %1117
        %v1120 = vsel %vm751, %v1116, 0
        %v1123 = vsel %vm835, %v1118, 0
        %1125 = vmatprep.subr.bf16.mxu0 0
        %1126 = vmatpush1.bf16.msra.mxu0 %v1123
        %1127 = vmatprep.subr.bf16.mxu0 0
        %1128 = vmatpush1.bf16.msra.mxu0 0
        %1129 = vmatprep.subr.bf16.mxu0 0
        %1130 = vmatpush1.bf16.msra.mxu0 0
        %1131 = vmatprep.subr.bf16.mxu0 0
        %1132 = vmatpush1.bf16.msra.mxu0 0
        %1133 = vmatprep.subr.bf16.mxu0 0
        %1134 = vmatpush1.bf16.msra.mxu0 0
        %1135 = vmatprep.subr.bf16.mxu0 0
        %1136 = vmatpush1.bf16.msra.mxu0 0
        %1137 = vmatprep.subr.bf16.mxu0 0
        %1138 = vmatpush1.bf16.msra.mxu0 0
        %1139 = vmatprep.subr.bf16.mxu0 0
        %1140 = vmatpush1.bf16.msra.mxu0 0
        %1141 = vmatprep.subr.bf16.mxu0 0
        %1142 = vmatpush1.bf16.msra.mxu0 0
        %1143 = vmatprep.subr.bf16.mxu0 0
        %1144 = vmatpush1.bf16.msra.mxu0 0
        %1145 = vmatprep.subr.bf16.mxu0 0
        %1146 = vmatpush1.bf16.msra.mxu0 0
        %1147 = vmatprep.subr.bf16.mxu0 0
        %1148 = vmatpush1.bf16.msra.mxu0 0
        %1149 = vmatprep.subr.bf16.mxu0 0
        %1150 = vmatpush1.bf16.msra.mxu0 0
        %1151 = vmatprep.subr.bf16.mxu0 0
        %1152 = vmatpush1.bf16.msra.mxu0 0
        %1153 = vmatprep.subr.bf16.mxu0 0
        %1154 = vmatpush1.bf16.msra.mxu0 0
        %1155 = vmatprep.subr.bf16.mxu0 0
        %1156 = vmatpush1.bf16.msra.mxu0 0
        %1157 = vmatprep.mubr.bf16.mxu0 0
        %1158 = vmatmul.mubr.bf16.gmra.mrb[0].mxu0 %v1120
        %v1159 = vpop.f32.mrb[0].mxu0
        %v1160 = vadd.f32 0.0, %v1159
        %v1161 = vpop.f32.mrb[0].mxu0
        %v1162 = vpop.f32.mrb[0].mxu0
        %v1163 = vpop.f32.mrb[0].mxu0
        %1164 = vdwg.mxu0
        %v1165 = vadd.f32 %v1115, %v1160
        %1166 = vst.msk [vmem:[%s1108] sm:$0xff] %vm751, %v1165
        %1167 = vst.msk [vmem:[%s1083] sm:$0xff] %vm822, %v1088
        %v1168 = vld [vmem:[#allocation2] sm:$0xf]
        %v1170 = vunpack.c.l.b16 %v1168
        %v1171 = vpack.c.b16 %v1170, %v1170
        %1172 = vrot.lane.b32.xlu0 %v1171, 104
        %v1173 = vpop.permute.xlu0 %1172
        %1174 = vrot.lane.b32.xlu0 %v678, 104
        %v1175 = vpop.permute.xlu0 %1174
        %v1177 = vsel %vm751, %v1173, 0
        %v1180 = vsel %vm751, %v1175, 0
        %1182 = vmatprep.subr.bf16.mxu0 0
        %1183 = vmatpush1.bf16.xpose.msra.mxu0 %v1180
        %1184 = vmatprep.subr.bf16.mxu0 0
        %1185 = vmatpush1.bf16.xpose.msra.mxu0 0
        %1186 = vmatprep.subr.bf16.mxu0 0
        %1187 = vmatpush1.bf16.xpose.msra.mxu0 0
        %1188 = vmatprep.subr.bf16.mxu0 0
        %1189 = vmatpush1.bf16.xpose.msra.mxu0 0
        %1190 = vmatprep.subr.bf16.mxu0 0
        %1191 = vmatpush1.bf16.xpose.msra.mxu0 0
        %1192 = vmatprep.subr.bf16.mxu0 0
        %1193 = vmatpush1.bf16.xpose.msra.mxu0 0
        %1194 = vmatprep.subr.bf16.mxu0 0
        %1195 = vmatpush1.bf16.xpose.msra.mxu0 0
        %1196 = vmatprep.subr.bf16.mxu0 0
        %1197 = vmatpush1.bf16.xpose.msra.mxu0 0
        %1198 = vmatprep.subr.bf16.mxu0 0
        %1199 = vmatpush1.bf16.xpose.msra.mxu0 0
        %1200 = vmatprep.subr.bf16.mxu0 0
        %1201 = vmatpush1.bf16.xpose.msra.mxu0 0
        %1202 = vmatprep.subr.bf16.mxu0 0
        %1203 = vmatpush1.bf16.xpose.msra.mxu0 0
        %1204 = vmatprep.subr.bf16.mxu0 0
        %1205 = vmatpush1.bf16.xpose.msra.mxu0 0
        %1206 = vmatprep.subr.bf16.mxu0 0
        %1207 = vmatpush1.bf16.xpose.msra.mxu0 0
        %1208 = vmatprep.subr.bf16.mxu0 0
        %1209 = vmatpush1.bf16.xpose.msra.mxu0 0
        %1210 = vmatprep.subr.bf16.mxu0 0
        %1211 = vmatpush1.bf16.xpose.msra.mxu0 0
        %1212 = vmatprep.subr.bf16.mxu0 0
        %1213 = vmatpush1.bf16.xpose.msra.mxu0 0
        %1214 = vmatprep.mubr.bf16.mxu0 0
        %1215 = vmatmul.mubr.bf16.gmra.mrb[0].mxu0 %v1177
        %v1216 = vpop.f32.mrb[0].mxu0
        %v1217 = vadd.f32 %v749, %v1216
        %v1218 = vpop.f32.mrb[0].mxu0
        %v1219 = vpop.f32.mrb[0].mxu0
        %v1220 = vpop.f32.mrb[0].mxu0
        %1221 = vdwg.mxu0
        %s1222 = scalar_lea.vmem %s513, 24 [#allocation16]
        %1223 = vst.msk [vmem:[%s1222] sm:$0xff] %vm751, %v1217
        %v1224 = vmax.f32 %v1217, -2.3819763e+38
        %s1225 = scalar_lea.vmem [#allocation3], 24
        %v1226 = vld [vmem:[%s1225] sm:$0xff]
        %v1227 = vsel %vm751, %v1224, -inf
        %1228 = vmax.xlane.f32.xlu0 %v1227
        %v1229 = vpop.xlane.xlu0 %1228
        %v1230 = vmax.f32 %v1226, %v1229
        %v1231 = vsub.f32 %v1226, %v1230
        %v1232 = vmul.f32 %v1231, 1.442695
        %v1233 = vpow.pop %v1232
        %1235 = vset.pattern.permute.xlu0 0
        %1236 = vperm.xlu0 %1235, %v1230
        %v1237 = vpop.permute.xlu0 %1236
        %v1239 = vsub.f32 %v1224, %v1237
        %v1240 = vmul.f32 %v1239, 1.442695
        %v1241 = vpow.pop %v1240
        %s1242 = scalar_lea.vmem [#allocation4], 24
        %v1243 = vld [vmem:[%s1242] sm:$0xff]
        %v1244 = vmul.f32 %v1233, %v1243
        %v1245 = vsel %vm751, %v1241, 0.0
        %1246 = vadd.xlane.f32.xlu0 %v1245
        %v1247 = vpop.xlane.xlu0 %1246
        %v1248 = vadd.f32 %v1244, %v1247
        %1249 = vst.msk [vmem:[%s1242] sm:$0xff] %vm822, %v1248
        %s1250 = scalar_lea.vmem [#allocation5], 24
        %v1251 = vld [vmem:[%s1250] sm:$0xff]
        %1253 = vset.pattern.permute.xlu0 0
        %1254 = vperm.xlu0 %1253, %v1233
        %v1255 = vpop.permute.xlu0 %1254
        %v1257 = vmul.f32 %v1255, %v1251
        %v1258 = vpack.c.bf16 %v1241, %v1241
        %1259 = vrot.lane.b32.xlu0 %v742, 104
        %v1260 = vpop.permute.xlu0 %1259
        %v1262 = vsel %vm751, %v1258, 0
        %v1265 = vsel %vm835, %v1260, 0
        %1267 = vmatprep.subr.bf16.mxu0 0
        %1268 = vmatpush1.bf16.msra.mxu0 %v1265
        %1269 = vmatprep.subr.bf16.mxu0 0
        %1270 = vmatpush1.bf16.msra.mxu0 0
        %1271 = vmatprep.subr.bf16.mxu0 0
        %1272 = vmatpush1.bf16.msra.mxu0 0
        %1273 = vmatprep.subr.bf16.mxu0 0
        %1274 = vmatpush1.bf16.msra.mxu0 0
        %1275 = vmatprep.subr.bf16.mxu0 0
        %1276 = vmatpush1.bf16.msra.mxu0 0
        %1277 = vmatprep.subr.bf16.mxu0 0
        %1278 = vmatpush1.bf16.msra.mxu0 0
        %1279 = vmatprep.subr.bf16.mxu0 0
        %1280 = vmatpush1.bf16.msra.mxu0 0
        %1281 = vmatprep.subr.bf16.mxu0 0
        %1282 = vmatpush1.bf16.msra.mxu0 0
        %1283 = vmatprep.subr.bf16.mxu0 0
        %1284 = vmatpush1.bf16.msra.mxu0 0
        %1285 = vmatprep.subr.bf16.mxu0 0
        %1286 = vmatpush1.bf16.msra.mxu0 0
        %1287 = vmatprep.subr.bf16.mxu0 0
        %1288 = vmatpush1.bf16.msra.mxu0 0
        %1289 = vmatprep.subr.bf16.mxu0 0
        %1290 = vmatpush1.bf16.msra.mxu0 0
        %1291 = vmatprep.subr.bf16.mxu0 0
        %1292 = vmatpush1.bf16.msra.mxu0 0
        %1293 = vmatprep.subr.bf16.mxu0 0
        %1294 = vmatpush1.bf16.msra.mxu0 0
        %1295 = vmatprep.subr.bf16.mxu0 0
        %1296 = vmatpush1.bf16.msra.mxu0 0
        %1297 = vmatprep.subr.bf16.mxu0 0
        %1298 = vmatpush1.bf16.msra.mxu0 0
        %1299 = vmatprep.mubr.bf16.mxu0 0
        %1300 = vmatmul.mubr.bf16.gmra.mrb[0].mxu0 %v1262
        %v1301 = vpop.f32.mrb[0].mxu0
        %v1302 = vadd.f32 0.0, %v1301
        %v1303 = vpop.f32.mrb[0].mxu0
        %v1304 = vpop.f32.mrb[0].mxu0
        %v1305 = vpop.f32.mrb[0].mxu0
        %1306 = vdwg.mxu0
        %v1307 = vadd.f32 %v1257, %v1302
        %1308 = vst.msk [vmem:[%s1250] sm:$0xff] %vm751, %v1307
        %1309 = vst.msk [vmem:[%s1225] sm:$0xff] %vm822, %v1230
        // Predicated region
        $region81: #{tpu_custom_call.1} parent=55 // pred_check
          %p1310 = pneg %p521
        $region82: #{tpu_custom_call.1} parent=55 // pred_check_branch
          %1312 = sbr.rel (%p1310) target = $region84
        $region83: #{tpu_custom_call.1} parent=55 // pred_region
          %v1313 = vld [vmem:[#allocation5] sm:$0xff]
          %v1314 = vld [vmem:[#allocation4] sm:$0xff]
          %v1315 = vrcp.pop %v1314
          %1317 = vset.pattern.permute.xlu0 0
          %1318 = vperm.xlu0 %1317, %v1315
          %v1319 = vpop.permute.xlu0 %1318
          %v1321 = vmul.f32 %v1313, %v1319
          %v1322 = vld [vmem:[%s965] sm:$0xff]
          %v1323 = vld [vmem:[%s957] sm:$0xff]
          %v1324 = vrcp.pop %v1323
          %1326 = vset.pattern.permute.xlu0 0
          %1327 = vperm.xlu0 %1326, %v1324
          %v1328 = vpop.permute.xlu0 %1327
          %v1330 = vmul.f32 %v1322, %v1328
          %v1331 = vld [vmem:[%s1108] sm:$0xff]
          %v1332 = vld [vmem:[%s1100] sm:$0xff]
          %v1333 = vrcp.pop %v1332
          %1335 = vset.pattern.permute.xlu0 0
          %1336 = vperm.xlu0 %1335, %v1333
          %v1337 = vpop.permute.xlu0 %1336
          %v1339 = vmul.f32 %v1331, %v1337
          %v1340 = vld [vmem:[%s1250] sm:$0xff]
          %v1341 = vld [vmem:[%s1242] sm:$0xff]
          %v1342 = vrcp.pop %v1341
          %1344 = vset.pattern.permute.xlu0 0
          %1345 = vperm.xlu0 %1344, %v1342
          %v1346 = vpop.permute.xlu0 %1345
          %v1348 = vmul.f32 %v1340, %v1346
          %1350 = vrot.lane.b32.xlu0 %v1330, 8
          %v1351 = vpop.permute.xlu0 %1350
          %1354 = vrot.lane.b32.xlu0 %v1339, 16
          %v1355 = vpop.permute.xlu0 %1354
          %1358 = vrot.lane.b32.xlu0 %v1348, 24
          %v1359 = vpop.permute.xlu0 %1358
          %v1361 = vsel %vm751, %v1321, %v1351
          %vm1362 = vcmask 130048
          %v1363 = vsel %vm1362, %v1361, %v1355
          %vm1364 = vcmask 195584
          %v1365 = vsel %vm1364, %v1363, %v1359
          %1366 = vst.msk [vmem:[%s506] sm:$0xff] %vm634, %v1365
        $region84: #{tpu_custom_call.1} parent=55 // pred_fallthru
          _
        %s1367 = sand.u32 %s274, 1
        %s1368 = scalar_lea.sflag [#allocation8], %s1367
        %s1369 = sand.u32 %s274, 1
        %s1370 = smul.addr %s1369, 8
        %s1371 = scalar_lea.vmem [#allocation15], %s1370
        %s1372 = sand.u32 %s304, 1
        %s1373 = scalar_lea.sflag [#allocation17], %s1372
        %s1374 = sand.u32 %s304, 1
        %s1375 = smul.addr %s1374, 32
        %s1376 = scalar_lea.vmem [#allocation16], %s1375
        // Predicated region
        $region85: #{tpu_custom_call.1} parent=55 // pred_check
          %p1377 = pneg %p284
        $region86: #{tpu_custom_call.1} parent=55 // pred_check_branch
          %1379 = sbr.rel (%p1377) target = $region88
        $region87: #{tpu_custom_call.1} parent=55 // pred_region
          %s1381 = ssub.s32 128, 128
          %1382 = vsyncadd %s1368, %s1381
          %s1383 = sadd.s32 %s41, %s40
          %s1384 = smul.addr %s1383, 128
          %s1385 = scalar_lea.hbm %s9, %s1384
          %s1387 = sshll.u32 %s1371, 4
          %s1388 = int_to_ptr.vmem [resolvable:$true] %s1387
          %1390 = dma.vmem_to_hbm [thread:$0]  %s1388, 128, %s1385, %s1368
        $region88: #{tpu_custom_call.1} parent=55 // pred_fallthru
          _
        // Predicated region
        $region89: #{tpu_custom_call.1} parent=55 // pred_check
          %p1391 = pneg %p314
        $region90: #{tpu_custom_call.1} parent=55 // pred_check_branch
          %1393 = sbr.rel (%p1391) target = $region92
        $region91: #{tpu_custom_call.1} parent=55 // pred_region
          %s1395 = ssub.s32 512, 512
          %1396 = vsyncadd %s1373, %s1395
          %s1397 = sadd.s32 %s42, %s41
          %s1398 = smul.addr %s40, 4
          %s1399 = sadd.s32 %s1397, %s1398
          %s1400 = smul.addr %s1399, 128
          %s1401 = scalar_lea.hbm %s10, %s1400
          %s1402 = sshll.u32 %s1376, 4
          %s1403 = int_to_ptr.vmem [resolvable:$true] %s1402
          %1408 = dma.vmem_to_hbm [thread:$0]  %s1403, 512, %s1401, %s1373, 128, 128, 8
        $region92: #{tpu_custom_call.1} parent=55 // pred_fallthru
          _
      $region56: #{tpu_custom_call.1} parent=5 // pred_fallthru
        _
      %p1409 = scmp.le.s32.totalorder 2, %s30
      // Predicated region
      $region93: #{tpu_custom_call.1} parent=5 // pred_check
        %p1410 = pneg %p1409
      $region94: #{tpu_custom_call.1} parent=5 // pred_check_branch
        %1412 = sbr.rel (%p1410) target = $region96
      $region95: #{tpu_custom_call.1} parent=5 // pred_region
        %s1413 = ssub.s32 %s30, 2
        // Predicated region
        $region97: #{tpu_custom_call.1} parent=95 // pred_check
          %p1414 = pneg %p290
        $region98: #{tpu_custom_call.1} parent=95 // pred_check_branch
          %1416 = sbr.rel (%p1414) target = $region100
        $region99: #{tpu_custom_call.1} parent=95 // pred_region
          %s1417 = sand.u32 %s275, 1
          %s1418 = scalar_lea.sflag [#allocation8], %s1417
          %s1419 = sand.u32 %s275, 1
          %s1420 = smul.addr %s1419, 8
          %s1421 = scalar_lea.vmem [#allocation15], %s1420
          %1422 = dma.done %s1418, 128
        $region100: #{tpu_custom_call.1} parent=95 // pred_fallthru
          _
        // Predicated region
        $region101: #{tpu_custom_call.1} parent=95 // pred_check
          %p1423 = pneg %p320
        $region102: #{tpu_custom_call.1} parent=95 // pred_check_branch
          %1425 = sbr.rel (%p1423) target = $region104
        $region103: #{tpu_custom_call.1} parent=95 // pred_region
          %s1426 = sand.u32 %s305, 1
          %s1427 = scalar_lea.sflag [#allocation17], %s1426
          %s1428 = sand.u32 %s305, 1
          %s1429 = smul.addr %s1428, 32
          %s1430 = scalar_lea.vmem [#allocation16], %s1429
          %1431 = dma.done %s1427, 512
        $region104: #{tpu_custom_call.1} parent=95 // pred_fallthru
          _
      $region96: #{tpu_custom_call.1} parent=5 // pred_fallthru
        _
    $region6: #{tpu_custom_call.1} parent=1 // loop_footer
      %s34 = sadd.s32 1, %s30
    $region7: #{tpu_custom_call.1} parent=1 // loop_footer_branch
      %29 = sbr.rel target = $region3
    $region8: #{tpu_custom_call.1} parent=1 // loop_exit
      _
    %1432 = vsyncpa [#allocation7], 1
    %s1433 = scalar_lea.sflag [#allocation7], 1
    %1434 = vsyncpa %s1433, 1
    %1435 = vsyncpa [#allocation10], 1
    %s1436 = scalar_lea.sflag [#allocation10], 1
    %1437 = vsyncpa %s1436, 1
    %1438 = vsyncpa [#allocation13], 1
    %1439 = vsyncpa [#allocation8], 1
    %s1440 = scalar_lea.sflag [#allocation8], 1
    %1441 = vsyncpa %s1440, 1
    %1442 = vsyncpa [#allocation17], 1
    %s1443 = scalar_lea.sflag [#allocation17], 1
    %1444 = vsyncpa %s1443, 1

</llo_original>
